<compile_context>
chip_gen: v5e
topology: v5e:2x2
jax: 0.10.0
libtpu: 0.0.40
codegen_flags: <defaults>
</compile_context>

<pallas_src>
import functools

import jax
import jax.numpy as jnp
from jax.experimental import pallas as pl
from jax.experimental.pallas import tpu as pltpu


# ---------------------------------------------------------------------------
# Fused per-sample kernel. One grid step == one batch sample.
# Activations are laid out (length, channels) throughout the conv stages.
# ---------------------------------------------------------------------------
def _abcnn_fused_kernel(x_ref, w1_ref, b1_ref, w2_ref, b2_ref,
                        fw1_ref, fb1_ref, fw2_ref, fb2_ref, fw3_ref, fb3_ref,
                        o_ref,
                        im1_ref, h1_ref, p1_ref, im2_ref, h2_ref, p2_ref,
                        flat_ref,
                        *, cin, c1, c2, l_in, k_size, pool):
    f32 = jnp.float32
    l1 = l_in - (k_size - 1)      # conv1 output length
    lp1 = l1 // pool              # pool1 output length
    l2 = lp1 - (k_size - 1)       # conv2 output length
    lp2 = l2 // pool              # pool2 output length

    # ---- conv1: build im2col (L1, K*Cin) from shifted windows of x ----------
    for k in range(k_size):
        im1_ref[:, k * cin:(k + 1) * cin] = x_ref[0, k:k + l1, :]
    a1 = jnp.dot(im1_ref[...], w1_ref[...], preferred_element_type=f32)
    h1_ref[...] = jnp.maximum(a1 + b1_ref[...], 0.0)          # bias + ReLU

    # ---- pool1: MaxPool1d(3) via 3 sublane-strided reads + elementwise max --
    p1_ref[...] = jnp.maximum(
        jnp.maximum(h1_ref[pl.ds(0, lp1, stride=pool), :],
                    h1_ref[pl.ds(1, lp1, stride=pool), :]),
        h1_ref[pl.ds(2, lp1, stride=pool), :])

    # ---- conv2: im2col (L2, K*C1) -------------------------------------------
    for k in range(k_size):
        im2_ref[:, k * c1:(k + 1) * c1] = p1_ref[k:k + l2, :]
    a2 = jnp.dot(im2_ref[...], w2_ref[...], preferred_element_type=f32)
    h2_ref[...] = jnp.maximum(a2 + b2_ref[...], 0.0)

    # ---- pool2 ---------------------------------------------------------------
    p2_ref[...] = jnp.maximum(
        jnp.maximum(h2_ref[pl.ds(0, lp2, stride=pool), :],
                    h2_ref[pl.ds(1, lp2, stride=pool), :]),
        h2_ref[pl.ds(2, lp2, stride=pool), :])

    # ---- flatten in (length-major) order; PyTorch's channel-major .view()
    #      ordering is folded into the pre-permuted fc1 weight (fw1) ----------
    for l in range(lp2):
        flat_ref[:, l * c2:(l + 1) * c2] = p2_ref[l:l + 1, :]

    # ---- fc1 -> ReLU -> fc2 -> ReLU -> fc3 -----------------------------------
    z = jnp.dot(flat_ref[...], fw1_ref[...], preferred_element_type=f32) + fb1_ref[...]
    z = jnp.maximum(z, 0.0)
    z = jnp.dot(z, fw2_ref[...], preferred_element_type=f32) + fb2_ref[...]
    z = jnp.maximum(z, 0.0)
    o_ref[0] = jnp.dot(z, fw3_ref[...], preferred_element_type=f32) + fb3_ref[...]


# ---------------------------------------------------------------------------
# One-time host-side parameter re-layout (hoisted out of the forward path).
# ---------------------------------------------------------------------------
def prepare_params(params):
    c1, cin, k = params["conv1_w"].shape
    c2 = params["conv2_w"].shape[0]
    lp2 = params["fc1_w"].shape[1] // c2          # per-channel flattened length

    def conv_w(w):  # (Cout, Cin, K) -> (K*Cin, Cout), row index = k*Cin + c
        return jnp.transpose(w, (2, 1, 0)).reshape(-1, w.shape[0]).astype(jnp.float32)

    # fc1 weight: (120, C2*Lp2) indexed [j, c*Lp2 + l]
    #          -> (Lp2*C2, 120) indexed [l*C2 + c, j]   (matches in-kernel flatten)
    fw1 = (params["fc1_w"].reshape(-1, c2, lp2)
           .transpose(2, 1, 0)
           .reshape(lp2 * c2, -1).astype(jnp.float32))

    return {
        "w1": conv_w(params["conv1_w"]),
        "b1": params["conv1_b"].reshape(1, -1).astype(jnp.float32),
        "w2": conv_w(params["conv2_w"]),
        "b2": params["conv2_b"].reshape(1, -1).astype(jnp.float32),
        "fw1": fw1,
        "fb1": params["fc1_b"].reshape(1, -1).astype(jnp.float32),
        "fw2": params["fc2_w"].T.astype(jnp.float32),
        "fb2": params["fc2_b"].reshape(1, -1).astype(jnp.float32),
        "fw3": params["fc3_w"].T.astype(jnp.float32),
        "fb3": params["fc3_b"].reshape(1, -1).astype(jnp.float32),
    }


# ---------------------------------------------------------------------------
# Forward: one fused pallas_call, grid over batch.
# ---------------------------------------------------------------------------
@jax.jit
def abcnn_1d_forward(x, p):
    n, cin, l_in = x.shape
    k_size, pool = 3, 3
    c1 = p["w1"].shape[1]
    c2 = p["w2"].shape[1]
    n_out = p["fw3"].shape[1]

    l1 = l_in - (k_size - 1)
    lp1 = l1 // pool
    l2 = lp1 - (k_size - 1)
    lp2 = l2 // pool
    n_flat = lp2 * c2
    assert n_flat == p["fw1"].shape[0], (n_flat, p["fw1"].shape)

    x_lc = jnp.transpose(x, (0, 2, 1)).astype(jnp.float32)    # (N, L, Cin)

    kernel = functools.partial(_abcnn_fused_kernel, cin=cin, c1=c1, c2=c2,
                               l_in=l_in, k_size=k_size, pool=pool)

    def const_spec(arr):   # whole-array block, resident across the batch grid
        shape = arr.shape
        return pl.BlockSpec(shape, lambda nidx: (0,) * len(shape))

    grid_spec = pltpu.PrefetchScalarGridSpec(
        num_scalar_prefetch=0,
        grid=(n,),
        in_specs=[
            pl.BlockSpec((1, l_in, cin), lambda nidx: (nidx, 0, 0)),
            const_spec(p["w1"]), const_spec(p["b1"]),
            const_spec(p["w2"]), const_spec(p["b2"]),
            const_spec(p["fw1"]), const_spec(p["fb1"]),
            const_spec(p["fw2"]), const_spec(p["fb2"]),
            const_spec(p["fw3"]), const_spec(p["fb3"]),
        ],
        out_specs=pl.BlockSpec((1, 1, n_out), lambda nidx: (nidx, 0, 0)),
        scratch_shapes=[
            pltpu.VMEM((l1, k_size * cin), jnp.float32),   # im2col, conv1
            pltpu.VMEM((l1, c1), jnp.float32),             # conv1 + ReLU
            pltpu.VMEM((lp1, c1), jnp.float32),            # pool1
            pltpu.VMEM((l2, k_size * c1), jnp.float32),    # im2col, conv2
            pltpu.VMEM((l2, c2), jnp.float32),             # conv2 + ReLU
            pltpu.VMEM((lp2, c2), jnp.float32),            # pool2
            pltpu.VMEM((1, n_flat), jnp.float32),          # flatten buffer
        ],
    )

    out = pl.pallas_call(
        kernel,
        out_shape=jax.ShapeDtypeStruct((n, 1, n_out), jnp.float32),
        grid_spec=grid_spec,
        compiler_params=pltpu.CompilerParams(
            dimension_semantics=("parallel",)),   # v7x: split batch across TCs
    )(x_lc, p["w1"], p["b1"], p["w2"], p["b2"],
      p["fw1"], p["fb1"], p["fw2"], p["fb2"], p["fw3"], p["fb3"])
    return out.reshape(n, n_out)


# ---------------------------------------------------------------------------
# Pure-JAX reference (PyTorch semantics) for a correctness check.
# ---------------------------------------------------------------------------
def reference_forward(x, p):
    def conv1d(x, w, b):
        n, _, l = x.shape
        o, _, k = w.shape
        lo = l - k + 1
        out = jnp.zeros((n, o, lo), jnp.float32)
        for kk in range(k):
            out = out + jnp.einsum("oc,ncl->nol", w[:, :, kk], x[:, :, kk:kk + lo])
        return out + b[None, :, None]

    def mpool(x, pool=3):
        n, c, l = x.shape
        lp = (l - pool) // pool + 1
        return jnp.max(x[:, :, :lp * pool].reshape(n, c, lp, pool), axis=-1)

    h = mpool(jnp.maximum(conv1d(x, p["conv1_w"], p["conv1_b"]), 0.0))
    h = mpool(jnp.maximum(conv1d(h, p["conv2_w"], p["conv2_b"]), 0.0))
    h = h.reshape(h.shape[0], -1)                    # channel-major flatten
    h = jnp.maximum(h @ p["fc1_w"].T + p["fc1_b"], 0.0)
    h = jnp.maximum(h @ p["fc2_w"].T + p["fc2_b"], 0.0)
    return h @ p["fc3_w"].T + p["fc3_b"]


# ---------------------------------------------------------------------------
# Deterministic parameter init (shapes from ABCNN_1D.__init__)
# ---------------------------------------------------------------------------
def init_params(key, in_channel, num_filters, max_crime):
    def uniform(key, shape, fan_in):
        bound = 1.0 / jnp.sqrt(jnp.float32(fan_in))
        return jax.random.uniform(key, shape, jnp.float32, -bound, bound)

    ks = jax.random.split(key, 10)
    nf, nf2 = num_filters, 2 * num_filters
    flat = nf2 * 27
    return {
        "conv1_w": uniform(ks[0], (nf, in_channel, 3), in_channel * 3),
        "conv1_b": uniform(ks[1], (nf,), in_channel * 3),
        "conv2_w": uniform(ks[2], (nf2, nf, 3), nf * 3),
        "conv2_b": uniform(ks[3], (nf2,), nf * 3),
        "fc1_w": uniform(ks[4], (120, flat), flat),
        "fc1_b": uniform(ks[5], (120,), flat),
        "fc2_w": uniform(ks[6], (84, 120), 120),
        "fc2_b": uniform(ks[7], (84,), 120),
        "fc3_w": uniform(ks[8], (max_crime, 84), 84),
        "fc3_b": uniform(ks[9], (max_crime,), 84),
    }


if __name__ == "__main__":
    # fc1 = Linear(2*num_filters*27, 120) implies floor((floor((L-2)/3)-2)/3)==27
    # -> L = 251.
    config = dict(in_channel=4, num_filters=8, max_crime=10)
    batch, seq_len = 2, 251

    key = jax.random.PRNGKey(0)
    k_param, k_x = jax.random.split(key)
    params = init_params(k_param, config["in_channel"], config["num_filters"],
                         config["max_crime"])
    x = jax.random.normal(k_x, (batch, config["in_channel"], seq_len), jnp.float32)

    prepped = prepare_params(params)           # one-time weight re-layout
    out = jax.block_until_ready(abcnn_1d_forward(x, prepped))
    ref = jax.block_until_ready(reference_forward(x, params))

    assert out.shape == (batch, config["max_crime"]), out.shape
    assert bool(jnp.all(jnp.isfinite(out)))
    # tolerance covers MXU default-precision f32 matmuls vs the einsum reference
    assert bool(jnp.allclose(out, ref, rtol=2e-2, atol=2e-2)), (out, ref)

    print("KERNEL_OK")
</pallas_src>

<mosaic_0001>
module attributes {stable_mosaic.version = 11 : i64} {
  func.func @_abcnn_fused_kernel(%arg0: i32, %arg1: memref<1x251x4xf32, #tpu.memory_space<vmem>>, %arg2: memref<12x8xf32, #tpu.memory_space<vmem>>, %arg3: memref<1x8xf32, #tpu.memory_space<vmem>>, %arg4: memref<24x16xf32, #tpu.memory_space<vmem>>, %arg5: memref<1x16xf32, #tpu.memory_space<vmem>>, %arg6: memref<432x120xf32, #tpu.memory_space<vmem>>, %arg7: memref<1x120xf32, #tpu.memory_space<vmem>>, %arg8: memref<120x84xf32, #tpu.memory_space<vmem>>, %arg9: memref<1x84xf32, #tpu.memory_space<vmem>>, %arg10: memref<84x10xf32, #tpu.memory_space<vmem>>, %arg11: memref<1x10xf32, #tpu.memory_space<vmem>>, %arg12: memref<1x1x10xf32, #tpu.memory_space<vmem>>, %arg13: memref<249x12xf32, #tpu.memory_space<vmem>>, %arg14: memref<249x8xf32, #tpu.memory_space<vmem>>, %arg15: memref<83x8xf32, #tpu.memory_space<vmem>>, %arg16: memref<81x24xf32, #tpu.memory_space<vmem>>, %arg17: memref<81x16xf32, #tpu.memory_space<vmem>>, %arg18: memref<27x16xf32, #tpu.memory_space<vmem>>, %arg19: memref<1x432xf32, #tpu.memory_space<vmem>>) attributes {dimension_semantics = [#tpu.dimension_semantics<parallel>], iteration_bounds = array<i64: 2>, scalar_prefetch = 0 : i64, scratch_operands = 7 : i64, tpu.core_type = #tpu.core_type<tc>, window_params = [{transform_indices = @transform_0, window_bounds = array<i64: 1, 251, 4>}, {pipeline_mode = #tpu.pipeline_mode<synchronous>, transform_indices = @transform_1, window_bounds = array<i64: 12, 8>}, {pipeline_mode = #tpu.pipeline_mode<synchronous>, transform_indices = @transform_2, window_bounds = array<i64: 1, 8>}, {pipeline_mode = #tpu.pipeline_mode<synchronous>, transform_indices = @transform_3, window_bounds = array<i64: 24, 16>}, {pipeline_mode = #tpu.pipeline_mode<synchronous>, transform_indices = @transform_4, window_bounds = array<i64: 1, 16>}, {pipeline_mode = #tpu.pipeline_mode<synchronous>, transform_indices = @transform_5, window_bounds = array<i64: 432, 120>}, {pipeline_mode = #tpu.pipeline_mode<synchronous>, transform_indices = @transform_6, window_bounds = array<i64: 1, 120>}, {pipeline_mode = #tpu.pipeline_mode<synchronous>, transform_indices = @transform_7, window_bounds = array<i64: 120, 84>}, {pipeline_mode = #tpu.pipeline_mode<synchronous>, transform_indices = @transform_8, window_bounds = array<i64: 1, 84>}, {pipeline_mode = #tpu.pipeline_mode<synchronous>, transform_indices = @transform_9, window_bounds = array<i64: 84, 10>}, {pipeline_mode = #tpu.pipeline_mode<synchronous>, transform_indices = @transform_10, window_bounds = array<i64: 1, 10>}, {transform_indices = @transform_11, window_bounds = array<i64: 1, 1, 10>}]} {
    %c0 = arith.constant 0 : index
    %c0_0 = arith.constant 0 : index
    %c0_1 = arith.constant 0 : index
    %0 = vector.load %arg1[%c0, %c0_0, %c0_1] : memref<1x251x4xf32, #tpu.memory_space<vmem>>, vector<1x249x4xf32>
    %1 = vector.shape_cast %0 : vector<1x249x4xf32> to vector<249x4xf32>
    %c0_2 = arith.constant 0 : index
    %c0_3 = arith.constant 0 : index
    %2 = vector.load %arg13[%c0_2, %c0_3] : memref<249x12xf32, #tpu.memory_space<vmem>>, vector<249x4xf32>
    tpu.vector_store %arg13[%c0_2, %c0_3], %1 {strides = array<i32>} : memref<249x12xf32, #tpu.memory_space<vmem>>, vector<249x4xf32>,
    %c0_4 = arith.constant 0 : index
    %c1 = arith.constant 1 : index
    %c0_5 = arith.constant 0 : index
    %3 = vector.load %arg1[%c0_4, %c1, %c0_5] : memref<1x251x4xf32, #tpu.memory_space<vmem>>, vector<1x249x4xf32>
    %4 = vector.shape_cast %3 : vector<1x249x4xf32> to vector<249x4xf32>
    %c0_6 = arith.constant 0 : index
    %c4 = arith.constant 4 : index
    %5 = vector.load %arg13[%c0_6, %c4] : memref<249x12xf32, #tpu.memory_space<vmem>>, vector<249x4xf32>
    tpu.vector_store %arg13[%c0_6, %c4], %4 {strides = array<i32>} : memref<249x12xf32, #tpu.memory_space<vmem>>, vector<249x4xf32>,
    %c0_7 = arith.constant 0 : index
    %c2 = arith.constant 2 : index
    %c0_8 = arith.constant 0 : index
    %6 = vector.load %arg1[%c0_7, %c2, %c0_8] : memref<1x251x4xf32, #tpu.memory_space<vmem>>, vector<1x249x4xf32>
    %7 = vector.shape_cast %6 : vector<1x249x4xf32> to vector<249x4xf32>
    %c0_9 = arith.constant 0 : index
    %c8 = arith.constant 8 : index
    %8 = vector.load %arg13[%c0_9, %c8] : memref<249x12xf32, #tpu.memory_space<vmem>>, vector<249x4xf32>
    tpu.vector_store %arg13[%c0_9, %c8], %7 {strides = array<i32>} : memref<249x12xf32, #tpu.memory_space<vmem>>, vector<249x4xf32>,
    %c0_10 = arith.constant 0 : index
    %c0_11 = arith.constant 0 : index
    %9 = vector.load %arg13[%c0_10, %c0_11] : memref<249x12xf32, #tpu.memory_space<vmem>>, vector<249x12xf32>
    %c0_12 = arith.constant 0 : index
    %c0_13 = arith.constant 0 : index
    %10 = vector.load %arg2[%c0_12, %c0_13] : memref<12x8xf32, #tpu.memory_space<vmem>>, vector<12x8xf32>
    %cst = arith.constant dense<0.000000e+00> : vector<249x8xf32>
    %11 = tpu.matmul %9, %10, %cst {dimension_numbers = #tpu.dot_dimension_numbers<[1], [0], [0], [1], [0, 0, 1, 1], [], []>} : vector<249x12xf32>, vector<12x8xf32>, vector<249x8xf32> -> vector<249x8xf32>
    %c0_14 = arith.constant 0 : index
    %c0_15 = arith.constant 0 : index
    %12 = vector.load %arg3[%c0_14, %c0_15] : memref<1x8xf32, #tpu.memory_space<vmem>>, vector<1x8xf32>
    %13 = vector.broadcast %12 : vector<1x8xf32> to vector<249x8xf32>
    %14 = arith.addf %11, %13 : vector<249x8xf32>
    %cst_16 = arith.constant 0.000000e+00 : f32
    %15 = vector.broadcast %cst_16 : f32 to vector<249x8xf32>
    %16 = arith.maximumf %14, %15 : vector<249x8xf32>
    %c0_17 = arith.constant 0 : index
    %c0_18 = arith.constant 0 : index
    %17 = vector.load %arg14[%c0_17, %c0_18] : memref<249x8xf32, #tpu.memory_space<vmem>>, vector<249x8xf32>
    tpu.vector_store %arg14[%c0_17, %c0_18], %16 {strides = array<i32>} : memref<249x8xf32, #tpu.memory_space<vmem>>, vector<249x8xf32>,
    %c0_19 = arith.constant 0 : index
    %c0_20 = arith.constant 0 : index
    %18 = tpu.strided_load %arg14[%c0_19, %c0_20] {strides = array<i32: 3, 1>} : memref<249x8xf32, #tpu.memory_space<vmem>>, vector<83x8xf32>
    %c1_21 = arith.constant 1 : index
    %c0_22 = arith.constant 0 : index
    %19 = tpu.strided_load %arg14[%c1_21, %c0_22] {strides = array<i32: 3, 1>} : memref<249x8xf32, #tpu.memory_space<vmem>>, vector<83x8xf32>
    %20 = arith.maximumf %18, %19 : vector<83x8xf32>
    %c2_23 = arith.constant 2 : index
    %c0_24 = arith.constant 0 : index
    %21 = tpu.strided_load %arg14[%c2_23, %c0_24] {strides = array<i32: 3, 1>} : memref<249x8xf32, #tpu.memory_space<vmem>>, vector<83x8xf32>
    %22 = arith.maximumf %20, %21 : vector<83x8xf32>
    %c0_25 = arith.constant 0 : index
    %c0_26 = arith.constant 0 : index
    %23 = vector.load %arg15[%c0_25, %c0_26] : memref<83x8xf32, #tpu.memory_space<vmem>>, vector<83x8xf32>
    tpu.vector_store %arg15[%c0_25, %c0_26], %22 {strides = array<i32>} : memref<83x8xf32, #tpu.memory_space<vmem>>, vector<83x8xf32>,
    %c0_27 = arith.constant 0 : index
    %c0_28 = arith.constant 0 : index
    %24 = vector.load %arg15[%c0_27, %c0_28] : memref<83x8xf32, #tpu.memory_space<vmem>>, vector<81x8xf32>
    %c0_29 = arith.constant 0 : index
    %c0_30 = arith.constant 0 : index
    %25 = vector.load %arg16[%c0_29, %c0_30] : memref<81x24xf32, #tpu.memory_space<vmem>>, vector<81x8xf32>
    tpu.vector_store %arg16[%c0_29, %c0_30], %24 {strides = array<i32>} : memref<81x24xf32, #tpu.memory_space<vmem>>, vector<81x8xf32>,
    %c1_31 = arith.constant 1 : index
    %c0_32 = arith.constant 0 : index
    %26 = vector.load %arg15[%c1_31, %c0_32] : memref<83x8xf32, #tpu.memory_space<vmem>>, vector<81x8xf32>
    %c0_33 = arith.constant 0 : index
    %c8_34 = arith.constant 8 : index
    %27 = vector.load %arg16[%c0_33, %c8_34] : memref<81x24xf32, #tpu.memory_space<vmem>>, vector<81x8xf32>
    tpu.vector_store %arg16[%c0_33, %c8_34], %26 {strides = array<i32>} : memref<81x24xf32, #tpu.memory_space<vmem>>, vector<81x8xf32>,
    %c2_35 = arith.constant 2 : index
    %c0_36 = arith.constant 0 : index
    %28 = vector.load %arg15[%c2_35, %c0_36] : memref<83x8xf32, #tpu.memory_space<vmem>>, vector<81x8xf32>
    %c0_37 = arith.constant 0 : index
    %c16 = arith.constant 16 : index
    %29 = vector.load %arg16[%c0_37, %c16] : memref<81x24xf32, #tpu.memory_space<vmem>>, vector<81x8xf32>
    tpu.vector_store %arg16[%c0_37, %c16], %28 {strides = array<i32>} : memref<81x24xf32, #tpu.memory_space<vmem>>, vector<81x8xf32>,
    %c0_38 = arith.constant 0 : index
    %c0_39 = arith.constant 0 : index
    %30 = vector.load %arg16[%c0_38, %c0_39] : memref<81x24xf32, #tpu.memory_space<vmem>>, vector<81x24xf32>
    %c0_40 = arith.constant 0 : index
    %c0_41 = arith.constant 0 : index
    %31 = vector.load %arg4[%c0_40, %c0_41] : memref<24x16xf32, #tpu.memory_space<vmem>>, vector<24x16xf32>
    %cst_42 = arith.constant dense<0.000000e+00> : vector<81x16xf32>
    %32 = tpu.matmul %30, %31, %cst_42 {dimension_numbers = #tpu.dot_dimension_numbers<[1], [0], [0], [1], [0, 0, 1, 1], [], []>} : vector<81x24xf32>, vector<24x16xf32>, vector<81x16xf32> -> vector<81x16xf32>
    %c0_43 = arith.constant 0 : index
    %c0_44 = arith.constant 0 : index
    %33 = vector.load %arg5[%c0_43, %c0_44] : memref<1x16xf32, #tpu.memory_space<vmem>>, vector<1x16xf32>
    %34 = vector.broadcast %33 : vector<1x16xf32> to vector<81x16xf32>
    %35 = arith.addf %32, %34 : vector<81x16xf32>
    %cst_45 = arith.constant 0.000000e+00 : f32
    %36 = vector.broadcast %cst_45 : f32 to vector<81x16xf32>
    %37 = arith.maximumf %35, %36 : vector<81x16xf32>
    %c0_46 = arith.constant 0 : index
    %c0_47 = arith.constant 0 : index
    %38 = vector.load %arg17[%c0_46, %c0_47] : memref<81x16xf32, #tpu.memory_space<vmem>>, vector<81x16xf32>
    tpu.vector_store %arg17[%c0_46, %c0_47], %37 {strides = array<i32>} : memref<81x16xf32, #tpu.memory_space<vmem>>, vector<81x16xf32>,
    %c0_48 = arith.constant 0 : index
    %c0_49 = arith.constant 0 : index
    %39 = tpu.strided_load %arg17[%c0_48, %c0_49] {strides = array<i32: 3, 1>} : memref<81x16xf32, #tpu.memory_space<vmem>>, vector<27x16xf32>
    %c1_50 = arith.constant 1 : index
    %c0_51 = arith.constant 0 : index
    %40 = tpu.strided_load %arg17[%c1_50, %c0_51] {strides = array<i32: 3, 1>} : memref<81x16xf32, #tpu.memory_space<vmem>>, vector<27x16xf32>
    %41 = arith.maximumf %39, %40 : vector<27x16xf32>
    %c2_52 = arith.constant 2 : index
    %c0_53 = arith.constant 0 : index
    %42 = tpu.strided_load %arg17[%c2_52, %c0_53] {strides = array<i32: 3, 1>} : memref<81x16xf32, #tpu.memory_space<vmem>>, vector<27x16xf32>
    %43 = arith.maximumf %41, %42 : vector<27x16xf32>
    %c0_54 = arith.constant 0 : index
    %c0_55 = arith.constant 0 : index
    %44 = vector.load %arg18[%c0_54, %c0_55] : memref<27x16xf32, #tpu.memory_space<vmem>>, vector<27x16xf32>
    tpu.vector_store %arg18[%c0_54, %c0_55], %43 {strides = array<i32>} : memref<27x16xf32, #tpu.memory_space<vmem>>, vector<27x16xf32>,
    %c0_56 = arith.constant 0 : index
    %c0_57 = arith.constant 0 : index
    %45 = vector.load %arg18[%c0_56, %c0_57] : memref<27x16xf32, #tpu.memory_space<vmem>>, vector<1x16xf32>
    %c0_58 = arith.constant 0 : index
    %c0_59 = arith.constant 0 : index
    %46 = vector.load %arg19[%c0_58, %c0_59] : memref<1x432xf32, #tpu.memory_space<vmem>>, vector<1x16xf32>
    tpu.vector_store %arg19[%c0_58, %c0_59], %45 {strides = array<i32>} : memref<1x432xf32, #tpu.memory_space<vmem>>, vector<1x16xf32>,
    %c1_60 = arith.constant 1 : index
    %c0_61 = arith.constant 0 : index
    %47 = vector.load %arg18[%c1_60, %c0_61] : memref<27x16xf32, #tpu.memory_space<vmem>>, vector<1x16xf32>
    %c0_62 = arith.constant 0 : index
    %c16_63 = arith.constant 16 : index
    %48 = vector.load %arg19[%c0_62, %c16_63] : memref<1x432xf32, #tpu.memory_space<vmem>>, vector<1x16xf32>
    tpu.vector_store %arg19[%c0_62, %c16_63], %47 {strides = array<i32>} : memref<1x432xf32, #tpu.memory_space<vmem>>, vector<1x16xf32>,
    %c2_64 = arith.constant 2 : index
    %c0_65 = arith.constant 0 : index
    %49 = vector.load %arg18[%c2_64, %c0_65] : memref<27x16xf32, #tpu.memory_space<vmem>>, vector<1x16xf32>
    %c0_66 = arith.constant 0 : index
    %c32 = arith.constant 32 : index
    %50 = vector.load %arg19[%c0_66, %c32] : memref<1x432xf32, #tpu.memory_space<vmem>>, vector<1x16xf32>
    tpu.vector_store %arg19[%c0_66, %c32], %49 {strides = array<i32>} : memref<1x432xf32, #tpu.memory_space<vmem>>, vector<1x16xf32>,
    %c3 = arith.constant 3 : index
    %c0_67 = arith.constant 0 : index
    %51 = vector.load %arg18[%c3, %c0_67] : memref<27x16xf32, #tpu.memory_space<vmem>>, vector<1x16xf32>
    %c0_68 = arith.constant 0 : index
    %c48 = arith.constant 48 : index
    %52 = vector.load %arg19[%c0_68, %c48] : memref<1x432xf32, #tpu.memory_space<vmem>>, vector<1x16xf32>
    tpu.vector_store %arg19[%c0_68, %c48], %51 {strides = array<i32>} : memref<1x432xf32, #tpu.memory_space<vmem>>, vector<1x16xf32>,
    %c4_69 = arith.constant 4 : index
    %c0_70 = arith.constant 0 : index
    %53 = vector.load %arg18[%c4_69, %c0_70] : memref<27x16xf32, #tpu.memory_space<vmem>>, vector<1x16xf32>
    %c0_71 = arith.constant 0 : index
    %c64 = arith.constant 64 : index
    %54 = vector.load %arg19[%c0_71, %c64] : memref<1x432xf32, #tpu.memory_space<vmem>>, vector<1x16xf32>
    tpu.vector_store %arg19[%c0_71, %c64], %53 {strides = array<i32>} : memref<1x432xf32, #tpu.memory_space<vmem>>, vector<1x16xf32>,
    %c5 = arith.constant 5 : index
    %c0_72 = arith.constant 0 : index
    %55 = vector.load %arg18[%c5, %c0_72] : memref<27x16xf32, #tpu.memory_space<vmem>>, vector<1x16xf32>
    %c0_73 = arith.constant 0 : index
    %c80 = arith.constant 80 : index
    %56 = vector.load %arg19[%c0_73, %c80] : memref<1x432xf32, #tpu.memory_space<vmem>>, vector<1x16xf32>
    tpu.vector_store %arg19[%c0_73, %c80], %55 {strides = array<i32>} : memref<1x432xf32, #tpu.memory_space<vmem>>, vector<1x16xf32>,
    %c6 = arith.constant 6 : index
    %c0_74 = arith.constant 0 : index
    %57 = vector.load %arg18[%c6, %c0_74] : memref<27x16xf32, #tpu.memory_space<vmem>>, vector<1x16xf32>
    %c0_75 = arith.constant 0 : index
    %c96 = arith.constant 96 : index
    %58 = vector.load %arg19[%c0_75, %c96] : memref<1x432xf32, #tpu.memory_space<vmem>>, vector<1x16xf32>
    tpu.vector_store %arg19[%c0_75, %c96], %57 {strides = array<i32>} : memref<1x432xf32, #tpu.memory_space<vmem>>, vector<1x16xf32>,
    %c7 = arith.constant 7 : index
    %c0_76 = arith.constant 0 : index
    %59 = vector.load %arg18[%c7, %c0_76] : memref<27x16xf32, #tpu.memory_space<vmem>>, vector<1x16xf32>
    %c0_77 = arith.constant 0 : index
    %c112 = arith.constant 112 : index
    %60 = vector.load %arg19[%c0_77, %c112] : memref<1x432xf32, #tpu.memory_space<vmem>>, vector<1x16xf32>
    tpu.vector_store %arg19[%c0_77, %c112], %59 {strides = array<i32>} : memref<1x432xf32, #tpu.memory_space<vmem>>, vector<1x16xf32>,
    %c8_78 = arith.constant 8 : index
    %c0_79 = arith.constant 0 : index
    %61 = vector.load %arg18[%c8_78, %c0_79] : memref<27x16xf32, #tpu.memory_space<vmem>>, vector<1x16xf32>
    %c0_80 = arith.constant 0 : index
    %c128 = arith.constant 128 : index
    %62 = vector.load %arg19[%c0_80, %c128] : memref<1x432xf32, #tpu.memory_space<vmem>>, vector<1x16xf32>
    tpu.vector_store %arg19[%c0_80, %c128], %61 {strides = array<i32>} : memref<1x432xf32, #tpu.memory_space<vmem>>, vector<1x16xf32>,
    %c9 = arith.constant 9 : index
    %c0_81 = arith.constant 0 : index
    %63 = vector.load %arg18[%c9, %c0_81] : memref<27x16xf32, #tpu.memory_space<vmem>>, vector<1x16xf32>
    %c0_82 = arith.constant 0 : index
    %c144 = arith.constant 144 : index
    %64 = vector.load %arg19[%c0_82, %c144] : memref<1x432xf32, #tpu.memory_space<vmem>>, vector<1x16xf32>
    tpu.vector_store %arg19[%c0_82, %c144], %63 {strides = array<i32>} : memref<1x432xf32, #tpu.memory_space<vmem>>, vector<1x16xf32>,
    %c10 = arith.constant 10 : index
    %c0_83 = arith.constant 0 : index
    %65 = vector.load %arg18[%c10, %c0_83] : memref<27x16xf32, #tpu.memory_space<vmem>>, vector<1x16xf32>
    %c0_84 = arith.constant 0 : index
    %c160 = arith.constant 160 : index
    %66 = vector.load %arg19[%c0_84, %c160] : memref<1x432xf32, #tpu.memory_space<vmem>>, vector<1x16xf32>
    tpu.vector_store %arg19[%c0_84, %c160], %65 {strides = array<i32>} : memref<1x432xf32, #tpu.memory_space<vmem>>, vector<1x16xf32>,
    %c11 = arith.constant 11 : index
    %c0_85 = arith.constant 0 : index
    %67 = vector.load %arg18[%c11, %c0_85] : memref<27x16xf32, #tpu.memory_space<vmem>>, vector<1x16xf32>
    %c0_86 = arith.constant 0 : index
    %c176 = arith.constant 176 : index
    %68 = vector.load %arg19[%c0_86, %c176] : memref<1x432xf32, #tpu.memory_space<vmem>>, vector<1x16xf32>
    tpu.vector_store %arg19[%c0_86, %c176], %67 {strides = array<i32>} : memref<1x432xf32, #tpu.memory_space<vmem>>, vector<1x16xf32>,
    %c12 = arith.constant 12 : index
    %c0_87 = arith.constant 0 : index
    %69 = vector.load %arg18[%c12, %c0_87] : memref<27x16xf32, #tpu.memory_space<vmem>>, vector<1x16xf32>
    %c0_88 = arith.constant 0 : index
    %c192 = arith.constant 192 : index
    %70 = vector.load %arg19[%c0_88, %c192] : memref<1x432xf32, #tpu.memory_space<vmem>>, vector<1x16xf32>
    tpu.vector_store %arg19[%c0_88, %c192], %69 {strides = array<i32>} : memref<1x432xf32, #tpu.memory_space<vmem>>, vector<1x16xf32>,
    %c13 = arith.constant 13 : index
    %c0_89 = arith.constant 0 : index
    %71 = vector.load %arg18[%c13, %c0_89] : memref<27x16xf32, #tpu.memory_space<vmem>>, vector<1x16xf32>
    %c0_90 = arith.constant 0 : index
    %c208 = arith.constant 208 : index
    %72 = vector.load %arg19[%c0_90, %c208] : memref<1x432xf32, #tpu.memory_space<vmem>>, vector<1x16xf32>
    tpu.vector_store %arg19[%c0_90, %c208], %71 {strides = array<i32>} : memref<1x432xf32, #tpu.memory_space<vmem>>, vector<1x16xf32>,
    %c14 = arith.constant 14 : index
    %c0_91 = arith.constant 0 : index
    %73 = vector.load %arg18[%c14, %c0_91] : memref<27x16xf32, #tpu.memory_space<vmem>>, vector<1x16xf32>
    %c0_92 = arith.constant 0 : index
    %c224 = arith.constant 224 : index
    %74 = vector.load %arg19[%c0_92, %c224] : memref<1x432xf32, #tpu.memory_space<vmem>>, vector<1x16xf32>
    tpu.vector_store %arg19[%c0_92, %c224], %73 {strides = array<i32>} : memref<1x432xf32, #tpu.memory_space<vmem>>, vector<1x16xf32>,
    %c15 = arith.constant 15 : index
    %c0_93 = arith.constant 0 : index
    %75 = vector.load %arg18[%c15, %c0_93] : memref<27x16xf32, #tpu.memory_space<vmem>>, vector<1x16xf32>
    %c0_94 = arith.constant 0 : index
    %c240 = arith.constant 240 : index
    %76 = vector.load %arg19[%c0_94, %c240] : memref<1x432xf32, #tpu.memory_space<vmem>>, vector<1x16xf32>
    tpu.vector_store %arg19[%c0_94, %c240], %75 {strides = array<i32>} : memref<1x432xf32, #tpu.memory_space<vmem>>, vector<1x16xf32>,
    %c16_95 = arith.constant 16 : index
    %c0_96 = arith.constant 0 : index
    %77 = vector.load %arg18[%c16_95, %c0_96] : memref<27x16xf32, #tpu.memory_space<vmem>>, vector<1x16xf32>
    %c0_97 = arith.constant 0 : index
    %c256 = arith.constant 256 : index
    %78 = vector.load %arg19[%c0_97, %c256] : memref<1x432xf32, #tpu.memory_space<vmem>>, vector<1x16xf32>
    tpu.vector_store %arg19[%c0_97, %c256], %77 {strides = array<i32>} : memref<1x432xf32, #tpu.memory_space<vmem>>, vector<1x16xf32>,
    %c17 = arith.constant 17 : index
    %c0_98 = arith.constant 0 : index
    %79 = vector.load %arg18[%c17, %c0_98] : memref<27x16xf32, #tpu.memory_space<vmem>>, vector<1x16xf32>
    %c0_99 = arith.constant 0 : index
    %c272 = arith.constant 272 : index
    %80 = vector.load %arg19[%c0_99, %c272] : memref<1x432xf32, #tpu.memory_space<vmem>>, vector<1x16xf32>
    tpu.vector_store %arg19[%c0_99, %c272], %79 {strides = array<i32>} : memref<1x432xf32, #tpu.memory_space<vmem>>, vector<1x16xf32>,
    %c18 = arith.constant 18 : index
    %c0_100 = arith.constant 0 : index
    %81 = vector.load %arg18[%c18, %c0_100] : memref<27x16xf32, #tpu.memory_space<vmem>>, vector<1x16xf32>
    %c0_101 = arith.constant 0 : index
    %c288 = arith.constant 288 : index
    %82 = vector.load %arg19[%c0_101, %c288] : memref<1x432xf32, #tpu.memory_space<vmem>>, vector<1x16xf32>
    tpu.vector_store %arg19[%c0_101, %c288], %81 {strides = array<i32>} : memref<1x432xf32, #tpu.memory_space<vmem>>, vector<1x16xf32>,
    %c19 = arith.constant 19 : index
    %c0_102 = arith.constant 0 : index
    %83 = vector.load %arg18[%c19, %c0_102] : memref<27x16xf32, #tpu.memory_space<vmem>>, vector<1x16xf32>
    %c0_103 = arith.constant 0 : index
    %c304 = arith.constant 304 : index
    %84 = vector.load %arg19[%c0_103, %c304] : memref<1x432xf32, #tpu.memory_space<vmem>>, vector<1x16xf32>
    tpu.vector_store %arg19[%c0_103, %c304], %83 {strides = array<i32>} : memref<1x432xf32, #tpu.memory_space<vmem>>, vector<1x16xf32>,
    %c20 = arith.constant 20 : index
    %c0_104 = arith.constant 0 : index
    %85 = vector.load %arg18[%c20, %c0_104] : memref<27x16xf32, #tpu.memory_space<vmem>>, vector<1x16xf32>
    %c0_105 = arith.constant 0 : index
    %c320 = arith.constant 320 : index
    %86 = vector.load %arg19[%c0_105, %c320] : memref<1x432xf32, #tpu.memory_space<vmem>>, vector<1x16xf32>
    tpu.vector_store %arg19[%c0_105, %c320], %85 {strides = array<i32>} : memref<1x432xf32, #tpu.memory_space<vmem>>, vector<1x16xf32>,
    %c21 = arith.constant 21 : index
    %c0_106 = arith.constant 0 : index
    %87 = vector.load %arg18[%c21, %c0_106] : memref<27x16xf32, #tpu.memory_space<vmem>>, vector<1x16xf32>
    %c0_107 = arith.constant 0 : index
    %c336 = arith.constant 336 : index
    %88 = vector.load %arg19[%c0_107, %c336] : memref<1x432xf32, #tpu.memory_space<vmem>>, vector<1x16xf32>
    tpu.vector_store %arg19[%c0_107, %c336], %87 {strides = array<i32>} : memref<1x432xf32, #tpu.memory_space<vmem>>, vector<1x16xf32>,
    %c22 = arith.constant 22 : index
    %c0_108 = arith.constant 0 : index
    %89 = vector.load %arg18[%c22, %c0_108] : memref<27x16xf32, #tpu.memory_space<vmem>>, vector<1x16xf32>
    %c0_109 = arith.constant 0 : index
    %c352 = arith.constant 352 : index
    %90 = vector.load %arg19[%c0_109, %c352] : memref<1x432xf32, #tpu.memory_space<vmem>>, vector<1x16xf32>
    tpu.vector_store %arg19[%c0_109, %c352], %89 {strides = array<i32>} : memref<1x432xf32, #tpu.memory_space<vmem>>, vector<1x16xf32>,
    %c23 = arith.constant 23 : index
    %c0_110 = arith.constant 0 : index
    %91 = vector.load %arg18[%c23, %c0_110] : memref<27x16xf32, #tpu.memory_space<vmem>>, vector<1x16xf32>
    %c0_111 = arith.constant 0 : index
    %c368 = arith.constant 368 : index
    %92 = vector.load %arg19[%c0_111, %c368] : memref<1x432xf32, #tpu.memory_space<vmem>>, vector<1x16xf32>
    tpu.vector_store %arg19[%c0_111, %c368], %91 {strides = array<i32>} : memref<1x432xf32, #tpu.memory_space<vmem>>, vector<1x16xf32>,
    %c24 = arith.constant 24 : index
    %c0_112 = arith.constant 0 : index
    %93 = vector.load %arg18[%c24, %c0_112] : memref<27x16xf32, #tpu.memory_space<vmem>>, vector<1x16xf32>
    %c0_113 = arith.constant 0 : index
    %c384 = arith.constant 384 : index
    %94 = vector.load %arg19[%c0_113, %c384] : memref<1x432xf32, #tpu.memory_space<vmem>>, vector<1x16xf32>
    tpu.vector_store %arg19[%c0_113, %c384], %93 {strides = array<i32>} : memref<1x432xf32, #tpu.memory_space<vmem>>, vector<1x16xf32>,
    %c25 = arith.constant 25 : index
    %c0_114 = arith.constant 0 : index
    %95 = vector.load %arg18[%c25, %c0_114] : memref<27x16xf32, #tpu.memory_space<vmem>>, vector<1x16xf32>
    %c0_115 = arith.constant 0 : index
    %c400 = arith.constant 400 : index
    %96 = vector.load %arg19[%c0_115, %c400] : memref<1x432xf32, #tpu.memory_space<vmem>>, vector<1x16xf32>
    tpu.vector_store %arg19[%c0_115, %c400], %95 {strides = array<i32>} : memref<1x432xf32, #tpu.memory_space<vmem>>, vector<1x16xf32>,
    %c26 = arith.constant 26 : index
    %c0_116 = arith.constant 0 : index
    %97 = vector.load %arg18[%c26, %c0_116] : memref<27x16xf32, #tpu.memory_space<vmem>>, vector<1x16xf32>
    %c0_117 = arith.constant 0 : index
    %c416 = arith.constant 416 : index
    %98 = vector.load %arg19[%c0_117, %c416] : memref<1x432xf32, #tpu.memory_space<vmem>>, vector<1x16xf32>
    tpu.vector_store %arg19[%c0_117, %c416], %97 {strides = array<i32>} : memref<1x432xf32, #tpu.memory_space<vmem>>, vector<1x16xf32>,
    %c0_118 = arith.constant 0 : index
    %c0_119 = arith.constant 0 : index
    %99 = vector.load %arg19[%c0_118, %c0_119] : memref<1x432xf32, #tpu.memory_space<vmem>>, vector<1x432xf32>
    %c0_120 = arith.constant 0 : index
    %c0_121 = arith.constant 0 : index
    %100 = vector.load %arg6[%c0_120, %c0_121] : memref<432x120xf32, #tpu.memory_space<vmem>>, vector<432x120xf32>
    %cst_122 = arith.constant dense<0.000000e+00> : vector<1x120xf32>
    %101 = tpu.matmul %99, %100, %cst_122 {dimension_numbers = #tpu.dot_dimension_numbers<[1], [0], [0], [1], [0, 0, 1, 1], [], []>} : vector<1x432xf32>, vector<432x120xf32>, vector<1x120xf32> -> vector<1x120xf32>
    %c0_123 = arith.constant 0 : index
    %c0_124 = arith.constant 0 : index
    %102 = vector.load %arg7[%c0_123, %c0_124] : memref<1x120xf32, #tpu.memory_space<vmem>>, vector<1x120xf32>
    %103 = arith.addf %101, %102 : vector<1x120xf32>
    %cst_125 = arith.constant 0.000000e+00 : f32
    %104 = vector.broadcast %cst_125 : f32 to vector<1x120xf32>
    %105 = arith.maximumf %103, %104 : vector<1x120xf32>
    %c0_126 = arith.constant 0 : index
    %c0_127 = arith.constant 0 : index
    %106 = vector.load %arg8[%c0_126, %c0_127] : memref<120x84xf32, #tpu.memory_space<vmem>>, vector<120x84xf32>
    %cst_128 = arith.constant dense<0.000000e+00> : vector<1x84xf32>
    %107 = tpu.matmul %105, %106, %cst_128 {dimension_numbers = #tpu.dot_dimension_numbers<[1], [0], [0], [1], [0, 0, 1, 1], [], []>} : vector<1x120xf32>, vector<120x84xf32>, vector<1x84xf32> -> vector<1x84xf32>
    %c0_129 = arith.constant 0 : index
    %c0_130 = arith.constant 0 : index
    %108 = vector.load %arg9[%c0_129, %c0_130] : memref<1x84xf32, #tpu.memory_space<vmem>>, vector<1x84xf32>
    %109 = arith.addf %107, %108 : vector<1x84xf32>
    %cst_131 = arith.constant 0.000000e+00 : f32
    %110 = vector.broadcast %cst_131 : f32 to vector<1x84xf32>
    %111 = arith.maximumf %109, %110 : vector<1x84xf32>
    %c0_132 = arith.constant 0 : index
    %c0_133 = arith.constant 0 : index
    %112 = vector.load %arg10[%c0_132, %c0_133] : memref<84x10xf32, #tpu.memory_space<vmem>>, vector<84x10xf32>
    %cst_134 = arith.constant dense<0.000000e+00> : vector<1x10xf32>
    %113 = tpu.matmul %111, %112, %cst_134 {dimension_numbers = #tpu.dot_dimension_numbers<[1], [0], [0], [1], [0, 0, 1, 1], [], []>} : vector<1x84xf32>, vector<84x10xf32>, vector<1x10xf32> -> vector<1x10xf32>
    %c0_135 = arith.constant 0 : index
    %c0_136 = arith.constant 0 : index
    %114 = vector.load %arg11[%c0_135, %c0_136] : memref<1x10xf32, #tpu.memory_space<vmem>>, vector<1x10xf32>
    %115 = arith.addf %113, %114 : vector<1x10xf32>
    %c0_137 = arith.constant 0 : index
    %c0_138 = arith.constant 0 : index
    %c0_139 = arith.constant 0 : index
    %116 = vector.load %arg12[%c0_137, %c0_138, %c0_139] : memref<1x1x10xf32, #tpu.memory_space<vmem>>, vector<1x1x10xf32>
    %117 = vector.shape_cast %116 : vector<1x1x10xf32> to vector<1x10xf32>
    %118 = vector.shape_cast %115 : vector<1x10xf32> to vector<1x1x10xf32>
    tpu.vector_store %arg12[%c0_137, %c0_138, %c0_139], %118 {strides = array<i32>} : memref<1x1x10xf32, #tpu.memory_space<vmem>>, vector<1x1x10xf32>,
    return
  }
  func.func @transform_0(%arg0: i32) -> (i32, i32, i32) {
    %c0_i32 = arith.constant 0 : i32
    %c0_i32_0 = arith.constant 0 : i32
    %c0_i32_1 = arith.constant 0 : i32
    return %arg0, %c0_i32, %c0_i32_0 : i32, i32, i32
  }
  func.func @transform_1(%arg0: i32) -> (i32, i32) {
    %c0_i32 = arith.constant 0 : i32
    %c0_i32_0 = arith.constant 0 : i32
    %c0_i32_1 = arith.constant 0 : i32
    return %c0_i32, %c0_i32_0 : i32, i32
  }
  func.func @transform_2(%arg0: i32) -> (i32, i32) {
    %c0_i32 = arith.constant 0 : i32
    %c0_i32_0 = arith.constant 0 : i32
    %c0_i32_1 = arith.constant 0 : i32
    return %c0_i32, %c0_i32_0 : i32, i32
  }
  func.func @transform_3(%arg0: i32) -> (i32, i32) {
    %c0_i32 = arith.constant 0 : i32
    %c0_i32_0 = arith.constant 0 : i32
    %c0_i32_1 = arith.constant 0 : i32
    return %c0_i32, %c0_i32_0 : i32, i32
  }
  func.func @transform_4(%arg0: i32) -> (i32, i32) {
    %c0_i32 = arith.constant 0 : i32
    %c0_i32_0 = arith.constant 0 : i32
    %c0_i32_1 = arith.constant 0 : i32
    return %c0_i32, %c0_i32_0 : i32, i32
  }
  func.func @transform_5(%arg0: i32) -> (i32, i32) {
    %c0_i32 = arith.constant 0 : i32
    %c0_i32_0 = arith.constant 0 : i32
    %c0_i32_1 = arith.constant 0 : i32
    return %c0_i32, %c0_i32_0 : i32, i32
  }
  func.func @transform_6(%arg0: i32) -> (i32, i32) {
    %c0_i32 = arith.constant 0 : i32
    %c0_i32_0 = arith.constant 0 : i32
    %c0_i32_1 = arith.constant 0 : i32
    return %c0_i32, %c0_i32_0 : i32, i32
  }
  func.func @transform_7(%arg0: i32) -> (i32, i32) {
    %c0_i32 = arith.constant 0 : i32
    %c0_i32_0 = arith.constant 0 : i32
    %c0_i32_1 = arith.constant 0 : i32
    return %c0_i32, %c0_i32_0 : i32, i32
  }
  func.func @transform_8(%arg0: i32) -> (i32, i32) {
    %c0_i32 = arith.constant 0 : i32
    %c0_i32_0 = arith.constant 0 : i32
    %c0_i32_1 = arith.constant 0 : i32
    return %c0_i32, %c0_i32_0 : i32, i32
  }
  func.func @transform_9(%arg0: i32) -> (i32, i32) {
    %c0_i32 = arith.constant 0 : i32
    %c0_i32_0 = arith.constant 0 : i32
    %c0_i32_1 = arith.constant 0 : i32
    return %c0_i32, %c0_i32_0 : i32, i32
  }
  func.func @transform_10(%arg0: i32) -> (i32, i32) {
    %c0_i32 = arith.constant 0 : i32
    %c0_i32_0 = arith.constant 0 : i32
    %c0_i32_1 = arith.constant 0 : i32
    return %c0_i32, %c0_i32_0 : i32, i32
  }
  func.func @transform_11(%arg0: i32) -> (i32, i32, i32) {
    %c0_i32 = arith.constant 0 : i32
    %c0_i32_0 = arith.constant 0 : i32
    %c0_i32_1 = arith.constant 0 : i32
    return %arg0, %c0_i32, %c0_i32_0 : i32, i32, i32
  }
}

</mosaic_0001>

<llo_original>
// kernel: abcnn_1d_forward.1
$region0: #{abcnn_1d_forward.1}
  #allocation0 [shape = 'u32[]', space=smem, size = 0x4, offset = 0x4, fixed_abs, tag = 'smem constant byte address 0x4 - core index']
  #allocation1 [shape = 'u32[72,128]{1,0:T(1,128)}', space=vmem, size = 0x9000, scoped, tag = 'internal scratch']
  #allocation2 [shape = 'f32[249,12]{1,0:T(8,128)}', space=vmem, size = 0x20000, scoped, tag = 'scratch operand']
  #allocation3 [shape = 'f32[249,8]{1,0:T(8,128)}', space=vmem, size = 0x20000, scoped, tag = 'scratch operand']
  #allocation4 [shape = 'f32[83,8]{1,0:T(8,128)}', space=vmem, size = 0xb000, scoped, tag = 'scratch operand']
  #allocation5 [shape = 'f32[81,24]{1,0:T(8,128)}', space=vmem, size = 0xb000, scoped, tag = 'scratch operand']
  #allocation6 [shape = 'f32[81,16]{1,0:T(8,128)}', space=vmem, size = 0xb000, scoped, tag = 'scratch operand']
  #allocation7 [shape = 'f32[27,16]{1,0:T(8,128)}', space=vmem, size = 0x4000, scoped, tag = 'scratch operand']
  #allocation8 [shape = 'f32[1,432]{1,0:T(1,128)}', space=vmem, size = 0x800, scoped, tag = 'scratch operand']
  %s0 = inlined_call_operand.vmem [shape: f32[2,251,4], index: 0, kind: input, shape index: {}]
  %s1 = inlined_call_operand.vmem [shape: f32[12,8], index: 1, kind: input, shape index: {}]
  %s2 = inlined_call_operand.vmem [shape: f32[1,8], index: 2, kind: input, shape index: {}]
  %s3 = inlined_call_operand.vmem [shape: f32[24,16], index: 3, kind: input, shape index: {}]
  %s4 = inlined_call_operand.vmem [shape: f32[1,16], index: 4, kind: input, shape index: {}]
  %s5 = inlined_call_operand.vmem [shape: f32[432,120], index: 5, kind: input, shape index: {}]
  %s6 = inlined_call_operand.vmem [shape: f32[1,120], index: 6, kind: input, shape index: {}]
  %s7 = inlined_call_operand.vmem [shape: f32[120,84], index: 7, kind: input, shape index: {}]
  %s8 = inlined_call_operand.vmem [shape: f32[1,84], index: 8, kind: input, shape index: {}]
  %s9 = inlined_call_operand.vmem [shape: f32[84,10], index: 9, kind: input, shape index: {}]
  %s10 = inlined_call_operand.vmem [shape: f32[1,10], index: 10, kind: input, shape index: {}]
  %s11 = inlined_call_operand.hbm [shape: f32[2,1,10], index: 11, kind: output, shape index: {}]
  %s12 = sld [smem:[#allocation0]]
  $region77: #{abcnn_1d_forward.1} parent=0
    _
  %s14 = ssub.s32 1, %s12
  %s15 = scalar_select 0, %s14, %s12
  $region1: #{abcnn_1d_forward.1} parent=0
    #allocation9 [shape = 'u8[1024]{0}', space=vmem, size = 0x400, scoped, tag = 'output window, operand 0']
    #allocation10 [shape = 's32[2]{0}', space=sflag, size = 0x8, scoped, tag = 'scoped memory for abcnn_1d_forward.1']
    %16 = vsyncpa [#allocation10], 0
    %s17 = scalar_lea.sflag [#allocation10], 1
    %18 = vsyncpa %s17, 0
    loop: start=0, step=1, limit=4
    $region2: #{abcnn_1d_forward.1} parent=1 // loop_pre_header
      _
    $region3: #{abcnn_1d_forward.1} parent=1 // loop_header
      %s20 = sphi 0, %s24
      %p21 = scmp.ge.s32.totalorder %s20, 4
      %s30 = sphi 0, %s32
      %s33 = sphi 0, %s30
      %s34 = sphi 0, %s33
      %s50 = sphi 0, %s34
      %s54 = sphi 0, %s54
      %s56 = sphi 0, %s54
      %s57 = sphi 0, %s56
      %s71 = sphi 0, %s57
      %s75 = sphi 0, %s75
      %s77 = sphi 0, %s75
      %s78 = sphi 0, %s77
      %s92 = sphi 0, %s78
      %s96 = sphi 0, %s96
      %s98 = sphi 0, %s96
      %s99 = sphi 0, %s98
      %s113 = sphi 0, %s99
      %s117 = sphi 0, %s117
      %s119 = sphi 0, %s117
      %s120 = sphi 0, %s119
      %s134 = sphi 0, %s120
      %s138 = sphi 0, %s138
      %s140 = sphi 0, %s138
      %s141 = sphi 0, %s140
      %s155 = sphi 0, %s141
      %s159 = sphi 0, %s159
      %s161 = sphi 0, %s159
      %s162 = sphi 0, %s161
      %s176 = sphi 0, %s162
      %s180 = sphi 0, %s180
      %s182 = sphi 0, %s180
      %s183 = sphi 0, %s182
      %s197 = sphi 0, %s183
      %s201 = sphi 0, %s201
      %s203 = sphi 0, %s201
      %s204 = sphi 0, %s203
      %s218 = sphi 0, %s204
      %s222 = sphi 0, %s222
      %s224 = sphi 0, %s222
      %s225 = sphi 0, %s224
      %s239 = sphi 0, %s225
      %s243 = sphi 0, %s243
      %s245 = sphi 0, %s243
      %s246 = sphi 0, %s245
      %s260 = sphi 0, %s246
      %s266 = sphi 0, %s268
      %s269 = sphi 0, %s266
      %s270 = sphi 0, %s269
      %s286 = sphi 0, %s270
    $region4: #{abcnn_1d_forward.1} parent=1 // loop_header_branch
      %23 = sbr.rel (%p21) target = $region8
    $region5: #{abcnn_1d_forward.1} parent=1 // loop_body
      %s25 = ssub.s32 %s20, 1
      %s26 = ssub.s32 %s20, 2
      %s27 = sadd.s32 %s20, 1
      %s28 = ssub.s32 %s20, %s27
      %p29 = scmp.eq.s32.totalorder %s28, 0
      %s31 = sadd.s32 %s30, 1
      %s32 = scalar_select %p29, %s30, %s31
      %p35 = pneg %p29
      %p36 = scmp.eq.s32.totalorder %s20, 1
      %p37 = por %p35, %p36
      %p38 = scmp.ne.s32.totalorder %s30, %s33
      %p39 = scmp.eq.s32.totalorder %s20, 0
      %p40 = por %p38, %p39
      %p41 = scmp.ne.s32.totalorder %s30, %s33
      %p42 = scmp.eq.s32.totalorder %s25, 1
      %p43 = por %p41, %p42
      %p44 = scmp.ne.s32.totalorder %s33, %s34
      %p45 = scmp.eq.s32.totalorder %s25, 0
      %p46 = por %p44, %p45
      %p47 = scmp.ne.s32.totalorder %s33, %s34
      %p48 = scmp.eq.s32.totalorder %s26, 1
      %p49 = por %p47, %p48
      %p51 = scmp.ne.s32.totalorder %s34, %s50
      %p52 = scmp.eq.s32.totalorder %s26, 0
      %p53 = por %p51, %p52
      %s55 = sadd.s32 %s54, 1
      %p58 = scmp.eq.s32.totalorder %s20, 1
      %p59 = scmp.ne.s32.totalorder %s54, %s56
      %p60 = scmp.eq.s32.totalorder %s20, 0
      %p61 = por %p59, %p60
      %p62 = scmp.ne.s32.totalorder %s54, %s56
      %p63 = scmp.eq.s32.totalorder %s25, 1
      %p64 = por %p62, %p63
      %p65 = scmp.ne.s32.totalorder %s56, %s57
      %p66 = scmp.eq.s32.totalorder %s25, 0
      %p67 = por %p65, %p66
      %p68 = scmp.ne.s32.totalorder %s56, %s57
      %p69 = scmp.eq.s32.totalorder %s26, 1
      %p70 = por %p68, %p69
      %p72 = scmp.ne.s32.totalorder %s57, %s71
      %p73 = scmp.eq.s32.totalorder %s26, 0
      %p74 = por %p72, %p73
      %s76 = sadd.s32 %s75, 1
      %p79 = scmp.eq.s32.totalorder %s20, 1
      %p80 = scmp.ne.s32.totalorder %s75, %s77
      %p81 = scmp.eq.s32.totalorder %s20, 0
      %p82 = por %p80, %p81
      %p83 = scmp.ne.s32.totalorder %s75, %s77
      %p84 = scmp.eq.s32.totalorder %s25, 1
      %p85 = por %p83, %p84
      %p86 = scmp.ne.s32.totalorder %s77, %s78
      %p87 = scmp.eq.s32.totalorder %s25, 0
      %p88 = por %p86, %p87
      %p89 = scmp.ne.s32.totalorder %s77, %s78
      %p90 = scmp.eq.s32.totalorder %s26, 1
      %p91 = por %p89, %p90
      %p93 = scmp.ne.s32.totalorder %s78, %s92
      %p94 = scmp.eq.s32.totalorder %s26, 0
      %p95 = por %p93, %p94
      %s97 = sadd.s32 %s96, 1
      %p100 = scmp.eq.s32.totalorder %s20, 1
      %p101 = scmp.ne.s32.totalorder %s96, %s98
      %p102 = scmp.eq.s32.totalorder %s20, 0
      %p103 = por %p101, %p102
      %p104 = scmp.ne.s32.totalorder %s96, %s98
      %p105 = scmp.eq.s32.totalorder %s25, 1
      %p106 = por %p104, %p105
      %p107 = scmp.ne.s32.totalorder %s98, %s99
      %p108 = scmp.eq.s32.totalorder %s25, 0
      %p109 = por %p107, %p108
      %p110 = scmp.ne.s32.totalorder %s98, %s99
      %p111 = scmp.eq.s32.totalorder %s26, 1
      %p112 = por %p110, %p111
      %p114 = scmp.ne.s32.totalorder %s99, %s113
      %p115 = scmp.eq.s32.totalorder %s26, 0
      %p116 = por %p114, %p115
      %s118 = sadd.s32 %s117, 1
      %p121 = scmp.eq.s32.totalorder %s20, 1
      %p122 = scmp.ne.s32.totalorder %s117, %s119
      %p123 = scmp.eq.s32.totalorder %s20, 0
      %p124 = por %p122, %p123
      %p125 = scmp.ne.s32.totalorder %s117, %s119
      %p126 = scmp.eq.s32.totalorder %s25, 1
      %p127 = por %p125, %p126
      %p128 = scmp.ne.s32.totalorder %s119, %s120
      %p129 = scmp.eq.s32.totalorder %s25, 0
      %p130 = por %p128, %p129
      %p131 = scmp.ne.s32.totalorder %s119, %s120
      %p132 = scmp.eq.s32.totalorder %s26, 1
      %p133 = por %p131, %p132
      %p135 = scmp.ne.s32.totalorder %s120, %s134
      %p136 = scmp.eq.s32.totalorder %s26, 0
      %p137 = por %p135, %p136
      %s139 = sadd.s32 %s138, 1
      %p142 = scmp.eq.s32.totalorder %s20, 1
      %p143 = scmp.ne.s32.totalorder %s138, %s140
      %p144 = scmp.eq.s32.totalorder %s20, 0
      %p145 = por %p143, %p144
      %p146 = scmp.ne.s32.totalorder %s138, %s140
      %p147 = scmp.eq.s32.totalorder %s25, 1
      %p148 = por %p146, %p147
      %p149 = scmp.ne.s32.totalorder %s140, %s141
      %p150 = scmp.eq.s32.totalorder %s25, 0
      %p151 = por %p149, %p150
      %p152 = scmp.ne.s32.totalorder %s140, %s141
      %p153 = scmp.eq.s32.totalorder %s26, 1
      %p154 = por %p152, %p153
      %p156 = scmp.ne.s32.totalorder %s141, %s155
      %p157 = scmp.eq.s32.totalorder %s26, 0
      %p158 = por %p156, %p157
      %s160 = sadd.s32 %s159, 1
      %p163 = scmp.eq.s32.totalorder %s20, 1
      %p164 = scmp.ne.s32.totalorder %s159, %s161
      %p165 = scmp.eq.s32.totalorder %s20, 0
      %p166 = por %p164, %p165
      %p167 = scmp.ne.s32.totalorder %s159, %s161
      %p168 = scmp.eq.s32.totalorder %s25, 1
      %p169 = por %p167, %p168
      %p170 = scmp.ne.s32.totalorder %s161, %s162
      %p171 = scmp.eq.s32.totalorder %s25, 0
      %p172 = por %p170, %p171
      %p173 = scmp.ne.s32.totalorder %s161, %s162
      %p174 = scmp.eq.s32.totalorder %s26, 1
      %p175 = por %p173, %p174
      %p177 = scmp.ne.s32.totalorder %s162, %s176
      %p178 = scmp.eq.s32.totalorder %s26, 0
      %p179 = por %p177, %p178
      %s181 = sadd.s32 %s180, 1
      %p184 = scmp.eq.s32.totalorder %s20, 1
      %p185 = scmp.ne.s32.totalorder %s180, %s182
      %p186 = scmp.eq.s32.totalorder %s20, 0
      %p187 = por %p185, %p186
      %p188 = scmp.ne.s32.totalorder %s180, %s182
      %p189 = scmp.eq.s32.totalorder %s25, 1
      %p190 = por %p188, %p189
      %p191 = scmp.ne.s32.totalorder %s182, %s183
      %p192 = scmp.eq.s32.totalorder %s25, 0
      %p193 = por %p191, %p192
      %p194 = scmp.ne.s32.totalorder %s182, %s183
      %p195 = scmp.eq.s32.totalorder %s26, 1
      %p196 = por %p194, %p195
      %p198 = scmp.ne.s32.totalorder %s183, %s197
      %p199 = scmp.eq.s32.totalorder %s26, 0
      %p200 = por %p198, %p199
      %s202 = sadd.s32 %s201, 1
      %p205 = scmp.eq.s32.totalorder %s20, 1
      %p206 = scmp.ne.s32.totalorder %s201, %s203
      %p207 = scmp.eq.s32.totalorder %s20, 0
      %p208 = por %p206, %p207
      %p209 = scmp.ne.s32.totalorder %s201, %s203
      %p210 = scmp.eq.s32.totalorder %s25, 1
      %p211 = por %p209, %p210
      %p212 = scmp.ne.s32.totalorder %s203, %s204
      %p213 = scmp.eq.s32.totalorder %s25, 0
      %p214 = por %p212, %p213
      %p215 = scmp.ne.s32.totalorder %s203, %s204
      %p216 = scmp.eq.s32.totalorder %s26, 1
      %p217 = por %p215, %p216
      %p219 = scmp.ne.s32.totalorder %s204, %s218
      %p220 = scmp.eq.s32.totalorder %s26, 0
      %p221 = por %p219, %p220
      %s223 = sadd.s32 %s222, 1
      %p226 = scmp.eq.s32.totalorder %s20, 1
      %p227 = scmp.ne.s32.totalorder %s222, %s224
      %p228 = scmp.eq.s32.totalorder %s20, 0
      %p229 = por %p227, %p228
      %p230 = scmp.ne.s32.totalorder %s222, %s224
      %p231 = scmp.eq.s32.totalorder %s25, 1
      %p232 = por %p230, %p231
      %p233 = scmp.ne.s32.totalorder %s224, %s225
      %p234 = scmp.eq.s32.totalorder %s25, 0
      %p235 = por %p233, %p234
      %p236 = scmp.ne.s32.totalorder %s224, %s225
      %p237 = scmp.eq.s32.totalorder %s26, 1
      %p238 = por %p236, %p237
      %p240 = scmp.ne.s32.totalorder %s225, %s239
      %p241 = scmp.eq.s32.totalorder %s26, 0
      %p242 = por %p240, %p241
      %s244 = sadd.s32 %s243, 1
      %p247 = scmp.eq.s32.totalorder %s20, 1
      %p248 = scmp.ne.s32.totalorder %s243, %s245
      %p249 = scmp.eq.s32.totalorder %s20, 0
      %p250 = por %p248, %p249
      %p251 = scmp.ne.s32.totalorder %s243, %s245
      %p252 = scmp.eq.s32.totalorder %s25, 1
      %p253 = por %p251, %p252
      %p254 = scmp.ne.s32.totalorder %s245, %s246
      %p255 = scmp.eq.s32.totalorder %s25, 0
      %p256 = por %p254, %p255
      %p257 = scmp.ne.s32.totalorder %s245, %s246
      %p258 = scmp.eq.s32.totalorder %s26, 1
      %p259 = por %p257, %p258
      %p261 = scmp.ne.s32.totalorder %s246, %s260
      %p262 = scmp.eq.s32.totalorder %s26, 0
      %p263 = por %p261, %p262
      %s264 = ssub.s32 %s20, %s27
      %p265 = scmp.eq.s32.totalorder %s264, 0
      %s267 = sadd.s32 %s266, 1
      %s268 = scalar_select %p265, %s266, %s267
      %p271 = pneg %p265
      %p272 = scmp.eq.s32.totalorder %s20, 1
      %p273 = por %p271, %p272
      %p274 = scmp.ne.s32.totalorder %s266, %s269
      %p275 = scmp.eq.s32.totalorder %s20, 0
      %p276 = por %p274, %p275
      %p277 = scmp.ne.s32.totalorder %s266, %s269
      %p278 = scmp.eq.s32.totalorder %s25, 1
      %p279 = por %p277, %p278
      %p280 = scmp.ne.s32.totalorder %s269, %s270
      %p281 = scmp.eq.s32.totalorder %s25, 0
      %p282 = por %p280, %p281
      %p283 = scmp.ne.s32.totalorder %s269, %s270
      %p284 = scmp.eq.s32.totalorder %s26, 1
      %p285 = por %p283, %p284
      %p287 = scmp.ne.s32.totalorder %s270, %s286
      %p288 = scmp.eq.s32.totalorder %s26, 0
      %p289 = por %p287, %p288
      %p290 = scmp.le.s32.totalorder 1, %s20
      %p291 = scmp.lt.s32.totalorder %s20, 3
      %p292 = pnand %p290, %p291
      %p293 = pneg %p292
      // Predicated region
      $region9: #{abcnn_1d_forward.1} parent=5 // pred_check
        _
      $region10: #{abcnn_1d_forward.1} parent=5 // pred_check_branch
        %295 = sbr.rel (%p292) target = $region12
      $region11: #{abcnn_1d_forward.1} parent=5 // pred_region
        %s296 = ssub.s32 %s20, 1
        // Predicated region
        $region13: #{abcnn_1d_forward.1} parent=11 // pred_check
          %p297 = pneg %p67
        $region14: #{abcnn_1d_forward.1} parent=11 // pred_check_branch
          %299 = sbr.rel (%p297) target = $region16
        $region15: #{abcnn_1d_forward.1} parent=11 // pred_region
          _
        $region16: #{abcnn_1d_forward.1} parent=11 // pred_fallthru
          _
        // Predicated region
        $region17: #{abcnn_1d_forward.1} parent=11 // pred_check
          %p300 = pneg %p88
        $region18: #{abcnn_1d_forward.1} parent=11 // pred_check_branch
          %302 = sbr.rel (%p300) target = $region20
        $region19: #{abcnn_1d_forward.1} parent=11 // pred_region
          _
        $region20: #{abcnn_1d_forward.1} parent=11 // pred_fallthru
          _
        // Predicated region
        $region21: #{abcnn_1d_forward.1} parent=11 // pred_check
          %p303 = pneg %p109
        $region22: #{abcnn_1d_forward.1} parent=11 // pred_check_branch
          %305 = sbr.rel (%p303) target = $region24
        $region23: #{abcnn_1d_forward.1} parent=11 // pred_region
          _
        $region24: #{abcnn_1d_forward.1} parent=11 // pred_fallthru
          _
        // Predicated region
        $region25: #{abcnn_1d_forward.1} parent=11 // pred_check
          %p306 = pneg %p130
        $region26: #{abcnn_1d_forward.1} parent=11 // pred_check_branch
          %308 = sbr.rel (%p306) target = $region28
        $region27: #{abcnn_1d_forward.1} parent=11 // pred_region
          _
        $region28: #{abcnn_1d_forward.1} parent=11 // pred_fallthru
          _
        // Predicated region
        $region29: #{abcnn_1d_forward.1} parent=11 // pred_check
          %p309 = pneg %p151
        $region30: #{abcnn_1d_forward.1} parent=11 // pred_check_branch
          %311 = sbr.rel (%p309) target = $region32
        $region31: #{abcnn_1d_forward.1} parent=11 // pred_region
          _
        $region32: #{abcnn_1d_forward.1} parent=11 // pred_fallthru
          _
        // Predicated region
        $region33: #{abcnn_1d_forward.1} parent=11 // pred_check
          %p312 = pneg %p172
        $region34: #{abcnn_1d_forward.1} parent=11 // pred_check_branch
          %314 = sbr.rel (%p312) target = $region36
        $region35: #{abcnn_1d_forward.1} parent=11 // pred_region
          _
        $region36: #{abcnn_1d_forward.1} parent=11 // pred_fallthru
          _
        // Predicated region
        $region37: #{abcnn_1d_forward.1} parent=11 // pred_check
          %p315 = pneg %p193
        $region38: #{abcnn_1d_forward.1} parent=11 // pred_check_branch
          %317 = sbr.rel (%p315) target = $region40
        $region39: #{abcnn_1d_forward.1} parent=11 // pred_region
          _
        $region40: #{abcnn_1d_forward.1} parent=11 // pred_fallthru
          _
        // Predicated region
        $region41: #{abcnn_1d_forward.1} parent=11 // pred_check
          %p318 = pneg %p214
        $region42: #{abcnn_1d_forward.1} parent=11 // pred_check_branch
          %320 = sbr.rel (%p318) target = $region44
        $region43: #{abcnn_1d_forward.1} parent=11 // pred_region
          _
        $region44: #{abcnn_1d_forward.1} parent=11 // pred_fallthru
          _
        // Predicated region
        $region45: #{abcnn_1d_forward.1} parent=11 // pred_check
          %p321 = pneg %p235
        $region46: #{abcnn_1d_forward.1} parent=11 // pred_check_branch
          %323 = sbr.rel (%p321) target = $region48
        $region47: #{abcnn_1d_forward.1} parent=11 // pred_region
          _
        $region48: #{abcnn_1d_forward.1} parent=11 // pred_fallthru
          _
        // Predicated region
        $region49: #{abcnn_1d_forward.1} parent=11 // pred_check
          %p324 = pneg %p256
        $region50: #{abcnn_1d_forward.1} parent=11 // pred_check_branch
          %326 = sbr.rel (%p324) target = $region52
        $region51: #{abcnn_1d_forward.1} parent=11 // pred_region
          _
        $region52: #{abcnn_1d_forward.1} parent=11 // pred_fallthru
          _
      $region12: #{abcnn_1d_forward.1} parent=5 // pred_fallthru
        _
      %p327 = scmp.lt.s32.totalorder %s20, 2
      // Predicated region
      $region53: #{abcnn_1d_forward.1} parent=5 // pred_check
        %p328 = pneg %p327
      $region54: #{abcnn_1d_forward.1} parent=5 // pred_check_branch
        %330 = sbr.rel (%p328) target = $region56
      $region55: #{abcnn_1d_forward.1} parent=5 // pred_region
        // Predicated region
        $region57: #{abcnn_1d_forward.1} parent=55 // pred_check
          %p331 = pneg %p40
        $region58: #{abcnn_1d_forward.1} parent=55 // pred_check_branch
          %333 = sbr.rel (%p331) target = $region60
        $region59: #{abcnn_1d_forward.1} parent=55 // pred_region
          %p334 = scmp.lt.s32.totalorder %s20, 1
          %s335 = scalar_select %p334, %s20, 1
          %s336 = smul.addr %s335, 32
          %s337 = smul.addr %s336, 8
          %s338 = scalar_lea.vmem %s0, %s337
        $region60: #{abcnn_1d_forward.1} parent=55 // pred_fallthru
          _
      $region56: #{abcnn_1d_forward.1} parent=5 // pred_fallthru
        _
      %p339 = scmp.le.s32.totalorder 1, %s20
      %p340 = scmp.lt.s32.totalorder %s20, 3
      %p341 = pnand %p339, %p340
      %p342 = pneg %p341
      // Predicated region
      $region61: #{abcnn_1d_forward.1} parent=5 // pred_check
        _
      $region62: #{abcnn_1d_forward.1} parent=5 // pred_check_branch
        %344 = sbr.rel (%p341) target = $region64
      $region63: #{abcnn_1d_forward.1} parent=5 // pred_region
        %s345 = ssub.s32 %s20, 1
        %p346 = scmp.lt.s32.totalorder %s25, 1
        %s347 = scalar_select %p346, %s25, 1
        %s348 = smul.addr %s347, 32
        %s349 = smul.addr %s348, 8
        %s350 = scalar_lea.vmem %s0, %s349
        %p351 = pneg %p46
        %p352 = pneg %p43
        %p353 = pneg %p67
        %p354 = pneg %p64
        %p355 = pneg %p88
        %p356 = pneg %p85
        %p357 = pneg %p109
        %p358 = pneg %p106
        %p359 = pneg %p130
        %p360 = pneg %p127
        %p361 = pneg %p151
        %p362 = pneg %p148
        %p363 = pneg %p172
        %p364 = pneg %p169
        %p365 = pneg %p193
        %p366 = pneg %p190
        %p367 = pneg %p214
        %p368 = pneg %p211
        %p369 = pneg %p235
        %p370 = pneg %p232
        %p371 = pneg %p256
        %p372 = pneg %p253
        %p373 = pneg %p282
        %p374 = pneg %p279
        %s375 = sand.u32 %s269, 1
        %s376 = scalar_lea.sflag [#allocation10], %s375
        %s377 = sand.u32 %s269, 1
        %s378 = scalar_lea.vmem [#allocation9], %s377
        %p379 = scmp.lt.s32.totalorder %s25, 1
        %s380 = scalar_select %p379, %s25, 1
        %s381 = smul.addr %s380, 32
        %s382 = smul.addr %s381, 8
        %s383 = scalar_lea.vmem %s0, %s382
        %v384 = vld [vmem:[%s383] sm:$0xff]
        %v385 = vld [vmem:[%s383 + $0x8] sm:$0xff]
        %v386 = vld [vmem:[%s383 + $0x10] sm:$0xff]
        %v387 = vld [vmem:[%s383 + $0x18] sm:$0xff]
        %v388 = vld [vmem:[%s383 + $0x20] sm:$0xff]
        %v389 = vld [vmem:[%s383 + $0x28] sm:$0xff]
        %v390 = vld [vmem:[%s383 + $0x30] sm:$0xff]
        %v391 = vld [vmem:[%s383 + $0x38] sm:$0xff]
        %v392 = vld [vmem:[%s383 + $0x40] sm:$0xff]
        %v393 = vld [vmem:[%s383 + $0x48] sm:$0xff]
        %v394 = vld [vmem:[%s383 + $0x50] sm:$0xff]
        %v395 = vld [vmem:[%s383 + $0x58] sm:$0xff]
        %v396 = vld [vmem:[%s383 + $0x60] sm:$0xff]
        %v397 = vld [vmem:[%s383 + $0x68] sm:$0xff]
        %v398 = vld [vmem:[%s383 + $0x70] sm:$0xff]
        %v399 = vld [vmem:[%s383 + $0x78] sm:$0xff]
        %v400 = vld [vmem:[%s383 + $0x80] sm:$0xff]
        %v401 = vld [vmem:[%s383 + $0x88] sm:$0xff]
        %v402 = vld [vmem:[%s383 + $0x90] sm:$0xff]
        %v403 = vld [vmem:[%s383 + $0x98] sm:$0xff]
        %v404 = vld [vmem:[%s383 + $0xa0] sm:$0xff]
        %v405 = vld [vmem:[%s383 + $0xa8] sm:$0xff]
        %v406 = vld [vmem:[%s383 + $0xb0] sm:$0xff]
        %v407 = vld [vmem:[%s383 + $0xb8] sm:$0xff]
        %v408 = vld [vmem:[%s383 + $0xc0] sm:$0xff]
        %v409 = vld [vmem:[%s383 + $0xc8] sm:$0xff]
        %v410 = vld [vmem:[%s383 + $0xd0] sm:$0xff]
        %v411 = vld [vmem:[%s383 + $0xd8] sm:$0xff]
        %v412 = vld [vmem:[%s383 + $0xe0] sm:$0xff]
        %v413 = vld [vmem:[%s383 + $0xe8] sm:$0xff]
        %v414 = vld [vmem:[%s383 + $0xf0] sm:$0xff]
        %v415 = vld [vmem:[%s383 + $0xf8] sm:$0x1]
        %vm416 = vcmask 31744
        %417 = vst.msk [vmem:[#allocation2] sm:$0xff] %vm416, %v384
        %418 = vst.msk [vmem:[#allocation2 + $0x8] sm:$0xff] %vm416, %v385
        %419 = vst.msk [vmem:[#allocation2 + $0x10] sm:$0xff] %vm416, %v386
        %420 = vst.msk [vmem:[#allocation2 + $0x18] sm:$0xff] %vm416, %v387
        %421 = vst.msk [vmem:[#allocation2 + $0x20] sm:$0xff] %vm416, %v388
        %422 = vst.msk [vmem:[#allocation2 + $0x28] sm:$0xff] %vm416, %v389
        %423 = vst.msk [vmem:[#allocation2 + $0x30] sm:$0xff] %vm416, %v390
        %424 = vst.msk [vmem:[#allocation2 + $0x38] sm:$0xff] %vm416, %v391
        %425 = vst.msk [vmem:[#allocation2 + $0x40] sm:$0xff] %vm416, %v392
        %426 = vst.msk [vmem:[#allocation2 + $0x48] sm:$0xff] %vm416, %v393
        %427 = vst.msk [vmem:[#allocation2 + $0x50] sm:$0xff] %vm416, %v394
        %428 = vst.msk [vmem:[#allocation2 + $0x58] sm:$0xff] %vm416, %v395
        %429 = vst.msk [vmem:[#allocation2 + $0x60] sm:$0xff] %vm416, %v396
        %430 = vst.msk [vmem:[#allocation2 + $0x68] sm:$0xff] %vm416, %v397
        %431 = vst.msk [vmem:[#allocation2 + $0x70] sm:$0xff] %vm416, %v398
        %432 = vst.msk [vmem:[#allocation2 + $0x78] sm:$0xff] %vm416, %v399
        %433 = vst.msk [vmem:[#allocation2 + $0x80] sm:$0xff] %vm416, %v400
        %434 = vst.msk [vmem:[#allocation2 + $0x88] sm:$0xff] %vm416, %v401
        %435 = vst.msk [vmem:[#allocation2 + $0x90] sm:$0xff] %vm416, %v402
        %436 = vst.msk [vmem:[#allocation2 + $0x98] sm:$0xff] %vm416, %v403
        %437 = vst.msk [vmem:[#allocation2 + $0xa0] sm:$0xff] %vm416, %v404
        %438 = vst.msk [vmem:[#allocation2 + $0xa8] sm:$0xff] %vm416, %v405
        %439 = vst.msk [vmem:[#allocation2 + $0xb0] sm:$0xff] %vm416, %v406
        %440 = vst.msk [vmem:[#allocation2 + $0xb8] sm:$0xff] %vm416, %v407
        %441 = vst.msk [vmem:[#allocation2 + $0xc0] sm:$0xff] %vm416, %v408
        %442 = vst.msk [vmem:[#allocation2 + $0xc8] sm:$0xff] %vm416, %v409
        %443 = vst.msk [vmem:[#allocation2 + $0xd0] sm:$0xff] %vm416, %v410
        %444 = vst.msk [vmem:[#allocation2 + $0xd8] sm:$0xff] %vm416, %v411
        %445 = vst.msk [vmem:[#allocation2 + $0xe0] sm:$0xff] %vm416, %v412
        %446 = vst.msk [vmem:[#allocation2 + $0xe8] sm:$0xff] %vm416, %v413
        %447 = vst.msk [vmem:[#allocation2 + $0xf0] sm:$0xff] %vm416, %v414
        %vm448 = vcmask 24576
        %449 = vst.msk [vmem:[#allocation2 + $0xf8] sm:$0x1] %vm448, %v415
        %v450 = vld [vmem:[%s383 + $0x1] sm:$0xff]
        %v451 = vld [vmem:[%s383 + $0x9] sm:$0xff]
        %v452 = vld [vmem:[%s383 + $0x11] sm:$0xff]
        %v453 = vld [vmem:[%s383 + $0x19] sm:$0xff]
        %v454 = vld [vmem:[%s383 + $0x21] sm:$0xff]
        %v455 = vld [vmem:[%s383 + $0x29] sm:$0xff]
        %v456 = vld [vmem:[%s383 + $0x31] sm:$0xff]
        %v457 = vld [vmem:[%s383 + $0x39] sm:$0xff]
        %v458 = vld [vmem:[%s383 + $0x41] sm:$0xff]
        %v459 = vld [vmem:[%s383 + $0x49] sm:$0xff]
        %v460 = vld [vmem:[%s383 + $0x51] sm:$0xff]
        %v461 = vld [vmem:[%s383 + $0x59] sm:$0xff]
        %v462 = vld [vmem:[%s383 + $0x61] sm:$0xff]
        %v463 = vld [vmem:[%s383 + $0x69] sm:$0xff]
        %v464 = vld [vmem:[%s383 + $0x71] sm:$0xff]
        %v465 = vld [vmem:[%s383 + $0x79] sm:$0xff]
        %v466 = vld [vmem:[%s383 + $0x81] sm:$0xff]
        %v467 = vld [vmem:[%s383 + $0x89] sm:$0xff]
        %v468 = vld [vmem:[%s383 + $0x91] sm:$0xff]
        %v469 = vld [vmem:[%s383 + $0x99] sm:$0xff]
        %v470 = vld [vmem:[%s383 + $0xa1] sm:$0xff]
        %v471 = vld [vmem:[%s383 + $0xa9] sm:$0xff]
        %v472 = vld [vmem:[%s383 + $0xb1] sm:$0xff]
        %v473 = vld [vmem:[%s383 + $0xb9] sm:$0xff]
        %v474 = vld [vmem:[%s383 + $0xc1] sm:$0xff]
        %v475 = vld [vmem:[%s383 + $0xc9] sm:$0xff]
        %v476 = vld [vmem:[%s383 + $0xd1] sm:$0xff]
        %v477 = vld [vmem:[%s383 + $0xd9] sm:$0xff]
        %v478 = vld [vmem:[%s383 + $0xe1] sm:$0xff]
        %v479 = vld [vmem:[%s383 + $0xe9] sm:$0xff]
        %v480 = vld [vmem:[%s383 + $0xf1] sm:$0xff]
        %v481 = vld [vmem:[%s383 + $0xf9] sm:$0x1]
        %514 = vrot.lane.b32.xlu0 %v450, 4
        %v515 = vpop.permute.xlu0 %514
        %516 = vrot.lane.b32.xlu0 %v451, 4
        %v517 = vpop.permute.xlu0 %516
        %518 = vrot.lane.b32.xlu0 %v452, 4
        %v519 = vpop.permute.xlu0 %518
        %520 = vrot.lane.b32.xlu0 %v453, 4
        %v521 = vpop.permute.xlu0 %520
        %522 = vrot.lane.b32.xlu0 %v454, 4
        %v523 = vpop.permute.xlu0 %522
        %524 = vrot.lane.b32.xlu0 %v455, 4
        %v525 = vpop.permute.xlu0 %524
        %526 = vrot.lane.b32.xlu0 %v456, 4
        %v527 = vpop.permute.xlu0 %526
        %528 = vrot.lane.b32.xlu0 %v457, 4
        %v529 = vpop.permute.xlu0 %528
        %530 = vrot.lane.b32.xlu0 %v458, 4
        %v531 = vpop.permute.xlu0 %530
        %532 = vrot.lane.b32.xlu0 %v459, 4
        %v533 = vpop.permute.xlu0 %532
        %534 = vrot.lane.b32.xlu0 %v460, 4
        %v535 = vpop.permute.xlu0 %534
        %536 = vrot.lane.b32.xlu0 %v461, 4
        %v537 = vpop.permute.xlu0 %536
        %538 = vrot.lane.b32.xlu0 %v462, 4
        %v539 = vpop.permute.xlu0 %538
        %540 = vrot.lane.b32.xlu0 %v463, 4
        %v541 = vpop.permute.xlu0 %540
        %542 = vrot.lane.b32.xlu0 %v464, 4
        %v543 = vpop.permute.xlu0 %542
        %544 = vrot.lane.b32.xlu0 %v465, 4
        %v545 = vpop.permute.xlu0 %544
        %546 = vrot.lane.b32.xlu0 %v466, 4
        %v547 = vpop.permute.xlu0 %546
        %548 = vrot.lane.b32.xlu0 %v467, 4
        %v549 = vpop.permute.xlu0 %548
        %550 = vrot.lane.b32.xlu0 %v468, 4
        %v551 = vpop.permute.xlu0 %550
        %552 = vrot.lane.b32.xlu0 %v469, 4
        %v553 = vpop.permute.xlu0 %552
        %554 = vrot.lane.b32.xlu0 %v470, 4
        %v555 = vpop.permute.xlu0 %554
        %556 = vrot.lane.b32.xlu0 %v471, 4
        %v557 = vpop.permute.xlu0 %556
        %558 = vrot.lane.b32.xlu0 %v472, 4
        %v559 = vpop.permute.xlu0 %558
        %560 = vrot.lane.b32.xlu0 %v473, 4
        %v561 = vpop.permute.xlu0 %560
        %562 = vrot.lane.b32.xlu0 %v474, 4
        %v563 = vpop.permute.xlu0 %562
        %564 = vrot.lane.b32.xlu0 %v475, 4
        %v565 = vpop.permute.xlu0 %564
        %566 = vrot.lane.b32.xlu0 %v476, 4
        %v567 = vpop.permute.xlu0 %566
        %568 = vrot.lane.b32.xlu0 %v477, 4
        %v569 = vpop.permute.xlu0 %568
        %570 = vrot.lane.b32.xlu0 %v478, 4
        %v571 = vpop.permute.xlu0 %570
        %572 = vrot.lane.b32.xlu0 %v479, 4
        %v573 = vpop.permute.xlu0 %572
        %574 = vrot.lane.b32.xlu0 %v480, 4
        %v575 = vpop.permute.xlu0 %574
        %576 = vrot.lane.b32.xlu0 %v481, 4
        %v577 = vpop.permute.xlu0 %576
        %vm610 = vcmask 64544
        %611 = vst.msk [vmem:[#allocation2] sm:$0xff] %vm610, %v515
        %612 = vst.msk [vmem:[#allocation2 + $0x8] sm:$0xff] %vm610, %v517
        %613 = vst.msk [vmem:[#allocation2 + $0x10] sm:$0xff] %vm610, %v519
        %614 = vst.msk [vmem:[#allocation2 + $0x18] sm:$0xff] %vm610, %v521
        %615 = vst.msk [vmem:[#allocation2 + $0x20] sm:$0xff] %vm610, %v523
        %616 = vst.msk [vmem:[#allocation2 + $0x28] sm:$0xff] %vm610, %v525
        %617 = vst.msk [vmem:[#allocation2 + $0x30] sm:$0xff] %vm610, %v527
        %618 = vst.msk [vmem:[#allocation2 + $0x38] sm:$0xff] %vm610, %v529
        %619 = vst.msk [vmem:[#allocation2 + $0x40] sm:$0xff] %vm610, %v531
        %620 = vst.msk [vmem:[#allocation2 + $0x48] sm:$0xff] %vm610, %v533
        %621 = vst.msk [vmem:[#allocation2 + $0x50] sm:$0xff] %vm610, %v535
        %622 = vst.msk [vmem:[#allocation2 + $0x58] sm:$0xff] %vm610, %v537
        %623 = vst.msk [vmem:[#allocation2 + $0x60] sm:$0xff] %vm610, %v539
        %624 = vst.msk [vmem:[#allocation2 + $0x68] sm:$0xff] %vm610, %v541
        %625 = vst.msk [vmem:[#allocation2 + $0x70] sm:$0xff] %vm610, %v543
        %626 = vst.msk [vmem:[#allocation2 + $0x78] sm:$0xff] %vm610, %v545
        %627 = vst.msk [vmem:[#allocation2 + $0x80] sm:$0xff] %vm610, %v547
        %628 = vst.msk [vmem:[#allocation2 + $0x88] sm:$0xff] %vm610, %v549
        %629 = vst.msk [vmem:[#allocation2 + $0x90] sm:$0xff] %vm610, %v551
        %630 = vst.msk [vmem:[#allocation2 + $0x98] sm:$0xff] %vm610, %v553
        %631 = vst.msk [vmem:[#allocation2 + $0xa0] sm:$0xff] %vm610, %v555
        %632 = vst.msk [vmem:[#allocation2 + $0xa8] sm:$0xff] %vm610, %v557
        %633 = vst.msk [vmem:[#allocation2 + $0xb0] sm:$0xff] %vm610, %v559
        %634 = vst.msk [vmem:[#allocation2 + $0xb8] sm:$0xff] %vm610, %v561
        %635 = vst.msk [vmem:[#allocation2 + $0xc0] sm:$0xff] %vm610, %v563
        %636 = vst.msk [vmem:[#allocation2 + $0xc8] sm:$0xff] %vm610, %v565
        %637 = vst.msk [vmem:[#allocation2 + $0xd0] sm:$0xff] %vm610, %v567
        %638 = vst.msk [vmem:[#allocation2 + $0xd8] sm:$0xff] %vm610, %v569
        %639 = vst.msk [vmem:[#allocation2 + $0xe0] sm:$0xff] %vm610, %v571
        %640 = vst.msk [vmem:[#allocation2 + $0xe8] sm:$0xff] %vm610, %v573
        %641 = vst.msk [vmem:[#allocation2 + $0xf0] sm:$0xff] %vm610, %v575
        %vm642 = vcmask 57376
        %643 = vst.msk [vmem:[#allocation2 + $0xf8] sm:$0x1] %vm642, %v577
        %v644 = vld [vmem:[%s383 + $0x2] sm:$0xff]
        %v645 = vld [vmem:[%s383 + $0xa] sm:$0xff]
        %v646 = vld [vmem:[%s383 + $0x12] sm:$0xff]
        %v647 = vld [vmem:[%s383 + $0x1a] sm:$0xff]
        %v648 = vld [vmem:[%s383 + $0x22] sm:$0xff]
        %v649 = vld [vmem:[%s383 + $0x2a] sm:$0xff]
        %v650 = vld [vmem:[%s383 + $0x32] sm:$0xff]
        %v651 = vld [vmem:[%s383 + $0x3a] sm:$0xff]
        %v652 = vld [vmem:[%s383 + $0x42] sm:$0xff]
        %v653 = vld [vmem:[%s383 + $0x4a] sm:$0xff]
        %v654 = vld [vmem:[%s383 + $0x52] sm:$0xff]
        %v655 = vld [vmem:[%s383 + $0x5a] sm:$0xff]
        %v656 = vld [vmem:[%s383 + $0x62] sm:$0xff]
        %v657 = vld [vmem:[%s383 + $0x6a] sm:$0xff]
        %v658 = vld [vmem:[%s383 + $0x72] sm:$0xff]
        %v659 = vld [vmem:[%s383 + $0x7a] sm:$0xff]
        %v660 = vld [vmem:[%s383 + $0x82] sm:$0xff]
        %v661 = vld [vmem:[%s383 + $0x8a] sm:$0xff]
        %v662 = vld [vmem:[%s383 + $0x92] sm:$0xff]
        %v663 = vld [vmem:[%s383 + $0x9a] sm:$0xff]
        %v664 = vld [vmem:[%s383 + $0xa2] sm:$0xff]
        %v665 = vld [vmem:[%s383 + $0xaa] sm:$0xff]
        %v666 = vld [vmem:[%s383 + $0xb2] sm:$0xff]
        %v667 = vld [vmem:[%s383 + $0xba] sm:$0xff]
        %v668 = vld [vmem:[%s383 + $0xc2] sm:$0xff]
        %v669 = vld [vmem:[%s383 + $0xca] sm:$0xff]
        %v670 = vld [vmem:[%s383 + $0xd2] sm:$0xff]
        %v671 = vld [vmem:[%s383 + $0xda] sm:$0xff]
        %v672 = vld [vmem:[%s383 + $0xe2] sm:$0xff]
        %v673 = vld [vmem:[%s383 + $0xea] sm:$0xff]
        %v674 = vld [vmem:[%s383 + $0xf2] sm:$0xff]
        %v675 = vld [vmem:[%s383 + $0xfa] sm:$0x1]
        %708 = vrot.lane.b32.xlu0 %v644, 8
        %v709 = vpop.permute.xlu0 %708
        %710 = vrot.lane.b32.xlu0 %v645, 8
        %v711 = vpop.permute.xlu0 %710
        %712 = vrot.lane.b32.xlu0 %v646, 8
        %v713 = vpop.permute.xlu0 %712
        %714 = vrot.lane.b32.xlu0 %v647, 8
        %v715 = vpop.permute.xlu0 %714
        %716 = vrot.lane.b32.xlu0 %v648, 8
        %v717 = vpop.permute.xlu0 %716
        %718 = vrot.lane.b32.xlu0 %v649, 8
        %v719 = vpop.permute.xlu0 %718
        %720 = vrot.lane.b32.xlu0 %v650, 8
        %v721 = vpop.permute.xlu0 %720
        %722 = vrot.lane.b32.xlu0 %v651, 8
        %v723 = vpop.permute.xlu0 %722
        %724 = vrot.lane.b32.xlu0 %v652, 8
        %v725 = vpop.permute.xlu0 %724
        %726 = vrot.lane.b32.xlu0 %v653, 8
        %v727 = vpop.permute.xlu0 %726
        %728 = vrot.lane.b32.xlu0 %v654, 8
        %v729 = vpop.permute.xlu0 %728
        %730 = vrot.lane.b32.xlu0 %v655, 8
        %v731 = vpop.permute.xlu0 %730
        %732 = vrot.lane.b32.xlu0 %v656, 8
        %v733 = vpop.permute.xlu0 %732
        %734 = vrot.lane.b32.xlu0 %v657, 8
        %v735 = vpop.permute.xlu0 %734
        %736 = vrot.lane.b32.xlu0 %v658, 8
        %v737 = vpop.permute.xlu0 %736
        %738 = vrot.lane.b32.xlu0 %v659, 8
        %v739 = vpop.permute.xlu0 %738
        %740 = vrot.lane.b32.xlu0 %v660, 8
        %v741 = vpop.permute.xlu0 %740
        %742 = vrot.lane.b32.xlu0 %v661, 8
        %v743 = vpop.permute.xlu0 %742
        %744 = vrot.lane.b32.xlu0 %v662, 8
        %v745 = vpop.permute.xlu0 %744
        %746 = vrot.lane.b32.xlu0 %v663, 8
        %v747 = vpop.permute.xlu0 %746
        %748 = vrot.lane.b32.xlu0 %v664, 8
        %v749 = vpop.permute.xlu0 %748
        %750 = vrot.lane.b32.xlu0 %v665, 8
        %v751 = vpop.permute.xlu0 %750
        %752 = vrot.lane.b32.xlu0 %v666, 8
        %v753 = vpop.permute.xlu0 %752
        %754 = vrot.lane.b32.xlu0 %v667, 8
        %v755 = vpop.permute.xlu0 %754
        %756 = vrot.lane.b32.xlu0 %v668, 8
        %v757 = vpop.permute.xlu0 %756
        %758 = vrot.lane.b32.xlu0 %v669, 8
        %v759 = vpop.permute.xlu0 %758
        %760 = vrot.lane.b32.xlu0 %v670, 8
        %v761 = vpop.permute.xlu0 %760
        %762 = vrot.lane.b32.xlu0 %v671, 8
        %v763 = vpop.permute.xlu0 %762
        %764 = vrot.lane.b32.xlu0 %v672, 8
        %v765 = vpop.permute.xlu0 %764
        %766 = vrot.lane.b32.xlu0 %v673, 8
        %v767 = vpop.permute.xlu0 %766
        %768 = vrot.lane.b32.xlu0 %v674, 8
        %v769 = vpop.permute.xlu0 %768
        %770 = vrot.lane.b32.xlu0 %v675, 8
        %v771 = vpop.permute.xlu0 %770
        %vm804 = vcmask 97344
        %805 = vst.msk [vmem:[#allocation2] sm:$0xff] %vm804, %v709
        %806 = vst.msk [vmem:[#allocation2 + $0x8] sm:$0xff] %vm804, %v711
        %807 = vst.msk [vmem:[#allocation2 + $0x10] sm:$0xff] %vm804, %v713
        %808 = vst.msk [vmem:[#allocation2 + $0x18] sm:$0xff] %vm804, %v715
        %809 = vst.msk [vmem:[#allocation2 + $0x20] sm:$0xff] %vm804, %v717
        %810 = vst.msk [vmem:[#allocation2 + $0x28] sm:$0xff] %vm804, %v719
        %811 = vst.msk [vmem:[#allocation2 + $0x30] sm:$0xff] %vm804, %v721
        %812 = vst.msk [vmem:[#allocation2 + $0x38] sm:$0xff] %vm804, %v723
        %813 = vst.msk [vmem:[#allocation2 + $0x40] sm:$0xff] %vm804, %v725
        %814 = vst.msk [vmem:[#allocation2 + $0x48] sm:$0xff] %vm804, %v727
        %815 = vst.msk [vmem:[#allocation2 + $0x50] sm:$0xff] %vm804, %v729
        %816 = vst.msk [vmem:[#allocation2 + $0x58] sm:$0xff] %vm804, %v731
        %817 = vst.msk [vmem:[#allocation2 + $0x60] sm:$0xff] %vm804, %v733
        %818 = vst.msk [vmem:[#allocation2 + $0x68] sm:$0xff] %vm804, %v735
        %819 = vst.msk [vmem:[#allocation2 + $0x70] sm:$0xff] %vm804, %v737
        %820 = vst.msk [vmem:[#allocation2 + $0x78] sm:$0xff] %vm804, %v739
        %821 = vst.msk [vmem:[#allocation2 + $0x80] sm:$0xff] %vm804, %v741
        %822 = vst.msk [vmem:[#allocation2 + $0x88] sm:$0xff] %vm804, %v743
        %823 = vst.msk [vmem:[#allocation2 + $0x90] sm:$0xff] %vm804, %v745
        %824 = vst.msk [vmem:[#allocation2 + $0x98] sm:$0xff] %vm804, %v747
        %825 = vst.msk [vmem:[#allocation2 + $0xa0] sm:$0xff] %vm804, %v749
        %826 = vst.msk [vmem:[#allocation2 + $0xa8] sm:$0xff] %vm804, %v751
        %827 = vst.msk [vmem:[#allocation2 + $0xb0] sm:$0xff] %vm804, %v753
        %828 = vst.msk [vmem:[#allocation2 + $0xb8] sm:$0xff] %vm804, %v755
        %829 = vst.msk [vmem:[#allocation2 + $0xc0] sm:$0xff] %vm804, %v757
        %830 = vst.msk [vmem:[#allocation2 + $0xc8] sm:$0xff] %vm804, %v759
        %831 = vst.msk [vmem:[#allocation2 + $0xd0] sm:$0xff] %vm804, %v761
        %832 = vst.msk [vmem:[#allocation2 + $0xd8] sm:$0xff] %vm804, %v763
        %833 = vst.msk [vmem:[#allocation2 + $0xe0] sm:$0xff] %vm804, %v765
        %834 = vst.msk [vmem:[#allocation2 + $0xe8] sm:$0xff] %vm804, %v767
        %835 = vst.msk [vmem:[#allocation2 + $0xf0] sm:$0xff] %vm804, %v769
        %vm836 = vcmask 90176
        %837 = vst.msk [vmem:[#allocation2 + $0xf8] sm:$0x1] %vm836, %v771
        %v838 = vld [vmem:[#allocation2] sm:$0xff]
        %v839 = vld [vmem:[#allocation2 + $0x8] sm:$0xff]
        %v840 = vld [vmem:[#allocation2 + $0x10] sm:$0xff]
        %v841 = vld [vmem:[#allocation2 + $0x18] sm:$0xff]
        %v842 = vld [vmem:[#allocation2 + $0x20] sm:$0xff]
        %v843 = vld [vmem:[#allocation2 + $0x28] sm:$0xff]
        %v844 = vld [vmem:[#allocation2 + $0x30] sm:$0xff]
        %v845 = vld [vmem:[#allocation2 + $0x38] sm:$0xff]
        %v846 = vld [vmem:[#allocation2 + $0x40] sm:$0xff]
        %v847 = vld [vmem:[#allocation2 + $0x48] sm:$0xff]
        %v848 = vld [vmem:[#allocation2 + $0x50] sm:$0xff]
        %v849 = vld [vmem:[#allocation2 + $0x58] sm:$0xff]
        %v850 = vld [vmem:[#allocation2 + $0x60] sm:$0xff]
        %v851 = vld [vmem:[#allocation2 + $0x68] sm:$0xff]
        %v852 = vld [vmem:[#allocation2 + $0x70] sm:$0xff]
        %v853 = vld [vmem:[#allocation2 + $0x78] sm:$0xff]
        %v854 = vld [vmem:[#allocation2 + $0x80] sm:$0xff]
        %v855 = vld [vmem:[#allocation2 + $0x88] sm:$0xff]
        %v856 = vld [vmem:[#allocation2 + $0x90] sm:$0xff]
        %v857 = vld [vmem:[#allocation2 + $0x98] sm:$0xff]
        %v858 = vld [vmem:[#allocation2 + $0xa0] sm:$0xff]
        %v859 = vld [vmem:[#allocation2 + $0xa8] sm:$0xff]
        %v860 = vld [vmem:[#allocation2 + $0xb0] sm:$0xff]
        %v861 = vld [vmem:[#allocation2 + $0xb8] sm:$0xff]
        %v862 = vld [vmem:[#allocation2 + $0xc0] sm:$0xff]
        %v863 = vld [vmem:[#allocation2 + $0xc8] sm:$0xff]
        %v864 = vld [vmem:[#allocation2 + $0xd0] sm:$0xff]
        %v865 = vld [vmem:[#allocation2 + $0xd8] sm:$0xff]
        %v866 = vld [vmem:[#allocation2 + $0xe0] sm:$0xff]
        %v867 = vld [vmem:[#allocation2 + $0xe8] sm:$0xff]
        %v868 = vld [vmem:[#allocation2 + $0xf0] sm:$0xff]
        %v869 = vld [vmem:[#allocation2 + $0xf8] sm:$0x1]
        %v870 = vld [vmem:[%s1] sm:$0xff]
        %v871 = vld [vmem:[%s1 + $0x8] sm:$0xf]
        %v872 = vld [vmem:[%s2] sm:$0x1]
        %v874 = vperm.slane %v872, 0
        %vm876 = vcmask 97280
        %v878 = vsel %vm876, %v838, 0
        %v881 = vsel %vm876, %v839, 0
        %v884 = vsel %vm876, %v840, 0
        %v887 = vsel %vm876, %v841, 0
        %v890 = vsel %vm876, %v842, 0
        %v893 = vsel %vm876, %v843, 0
        %v896 = vsel %vm876, %v844, 0
        %v899 = vsel %vm876, %v845, 0
        %v902 = vsel %vm876, %v846, 0
        %v905 = vsel %vm876, %v847, 0
        %v908 = vsel %vm876, %v848, 0
        %v911 = vsel %vm876, %v849, 0
        %v914 = vsel %vm876, %v850, 0
        %v917 = vsel %vm876, %v851, 0
        %v920 = vsel %vm876, %v852, 0
        %v923 = vsel %vm876, %v853, 0
        %v926 = vsel %vm876, %v854, 0
        %v929 = vsel %vm876, %v855, 0
        %v932 = vsel %vm876, %v856, 0
        %v935 = vsel %vm876, %v857, 0
        %v938 = vsel %vm876, %v858, 0
        %v941 = vsel %vm876, %v859, 0
        %v944 = vsel %vm876, %v860, 0
        %v947 = vsel %vm876, %v861, 0
        %v950 = vsel %vm876, %v862, 0
        %v953 = vsel %vm876, %v863, 0
        %v956 = vsel %vm876, %v864, 0
        %v959 = vsel %vm876, %v865, 0
        %v962 = vsel %vm876, %v866, 0
        %v965 = vsel %vm876, %v867, 0
        %v968 = vsel %vm876, %v868, 0
        %v971 = vsel %vm876, %v869, 0
        %vm973 = vcmask 1043456
        %v975 = vsel %vm973, %v871, 0
        %977 = vmatpush.msra.mxu0 0.0
        %978 = vmatpush.msra.mxu0 0.0
        %979 = vmatpush.msra.mxu0 0.0
        %980 = vmatpush.msra.mxu0 0.0
        %981 = vmatpush.msra.mxu0 0.0
        %982 = vmatpush.msra.mxu0 0.0
        %983 = vmatpush.msra.mxu0 0.0
        %984 = vmatpush.msra.mxu0 0.0
        %985 = vmatpush.msra.mxu0 0.0
        %986 = vmatpush.msra.mxu0 0.0
        %987 = vmatpush.msra.mxu0 0.0
        %988 = vmatpush.msra.mxu0 0.0
        %989 = vmatpush.msra.mxu0 0.0
        %990 = vmatpush.msra.mxu0 0.0
        %991 = vmatpush.msra.mxu0 %v975
        %992 = vmatpush.msra.mxu0 %v870
        %993 = vmatmul.f32.gmra.mxu0 %v878
        %v994 = vpop.f32.mrf.mxu0
        %v995 = vadd.f32 %v874, %v994
        %996 = vmatmul.f32.gmra.mxu0 %v881
        %v997 = vpop.f32.mrf.mxu0
        %v998 = vadd.f32 %v874, %v997
        %999 = vmatmul.f32.gmra.mxu0 %v884
        %v1000 = vpop.f32.mrf.mxu0
        %v1001 = vadd.f32 %v874, %v1000
        %1002 = vmatmul.f32.gmra.mxu0 %v887
        %v1003 = vpop.f32.mrf.mxu0
        %v1004 = vadd.f32 %v874, %v1003
        %1005 = vmatmul.f32.gmra.mxu0 %v890
        %v1006 = vpop.f32.mrf.mxu0
        %v1007 = vadd.f32 %v874, %v1006
        %1008 = vmatmul.f32.gmra.mxu0 %v893
        %v1009 = vpop.f32.mrf.mxu0
        %v1010 = vadd.f32 %v874, %v1009
        %1011 = vmatmul.f32.gmra.mxu0 %v896
        %v1012 = vpop.f32.mrf.mxu0
        %v1013 = vadd.f32 %v874, %v1012
        %1014 = vmatmul.f32.gmra.mxu0 %v899
        %v1015 = vpop.f32.mrf.mxu0
        %v1016 = vadd.f32 %v874, %v1015
        %1017 = vmatmul.f32.gmra.mxu0 %v902
        %v1018 = vpop.f32.mrf.mxu0
        %v1019 = vadd.f32 %v874, %v1018
        %1020 = vmatmul.f32.gmra.mxu0 %v905
        %v1021 = vpop.f32.mrf.mxu0
        %v1022 = vadd.f32 %v874, %v1021
        %1023 = vmatmul.f32.gmra.mxu0 %v908
        %v1024 = vpop.f32.mrf.mxu0
        %v1025 = vadd.f32 %v874, %v1024
        %1026 = vmatmul.f32.gmra.mxu0 %v911
        %v1027 = vpop.f32.mrf.mxu0
        %v1028 = vadd.f32 %v874, %v1027
        %1029 = vmatmul.f32.gmra.mxu0 %v914
        %v1030 = vpop.f32.mrf.mxu0
        %v1031 = vadd.f32 %v874, %v1030
        %1032 = vmatmul.f32.gmra.mxu0 %v917
        %v1033 = vpop.f32.mrf.mxu0
        %v1034 = vadd.f32 %v874, %v1033
        %1035 = vmatmul.f32.gmra.mxu0 %v920
        %v1036 = vpop.f32.mrf.mxu0
        %v1037 = vadd.f32 %v874, %v1036
        %1038 = vmatmul.f32.gmra.mxu0 %v923
        %v1039 = vpop.f32.mrf.mxu0
        %v1040 = vadd.f32 %v874, %v1039
        %1041 = vmatmul.f32.gmra.mxu0 %v926
        %v1042 = vpop.f32.mrf.mxu0
        %v1043 = vadd.f32 %v874, %v1042
        %1044 = vmatmul.f32.gmra.mxu0 %v929
        %v1045 = vpop.f32.mrf.mxu0
        %v1046 = vadd.f32 %v874, %v1045
        %1047 = vmatmul.f32.gmra.mxu0 %v932
        %v1048 = vpop.f32.mrf.mxu0
        %v1049 = vadd.f32 %v874, %v1048
        %1050 = vmatmul.f32.gmra.mxu0 %v935
        %v1051 = vpop.f32.mrf.mxu0
        %v1052 = vadd.f32 %v874, %v1051
        %1053 = vmatmul.f32.gmra.mxu0 %v938
        %v1054 = vpop.f32.mrf.mxu0
        %v1055 = vadd.f32 %v874, %v1054
        %1056 = vmatmul.f32.gmra.mxu0 %v941
        %v1057 = vpop.f32.mrf.mxu0
        %v1058 = vadd.f32 %v874, %v1057
        %1059 = vmatmul.f32.gmra.mxu0 %v944
        %v1060 = vpop.f32.mrf.mxu0
        %v1061 = vadd.f32 %v874, %v1060
        %1062 = vmatmul.f32.gmra.mxu0 %v947
        %v1063 = vpop.f32.mrf.mxu0
        %v1064 = vadd.f32 %v874, %v1063
        %1065 = vmatmul.f32.gmra.mxu0 %v950
        %v1066 = vpop.f32.mrf.mxu0
        %v1067 = vadd.f32 %v874, %v1066
        %1068 = vmatmul.f32.gmra.mxu0 %v953
        %v1069 = vpop.f32.mrf.mxu0
        %v1070 = vadd.f32 %v874, %v1069
        %1071 = vmatmul.f32.gmra.mxu0 %v956
        %v1072 = vpop.f32.mrf.mxu0
        %v1073 = vadd.f32 %v874, %v1072
        %1074 = vmatmul.f32.gmra.mxu0 %v959
        %v1075 = vpop.f32.mrf.mxu0
        %v1076 = vadd.f32 %v874, %v1075
        %1077 = vmatmul.f32.gmra.mxu0 %v962
        %v1078 = vpop.f32.mrf.mxu0
        %v1079 = vadd.f32 %v874, %v1078
        %1080 = vmatmul.f32.gmra.mxu0 %v965
        %v1081 = vpop.f32.mrf.mxu0
        %v1082 = vadd.f32 %v874, %v1081
        %1083 = vmatmul.f32.gmra.mxu0 %v968
        %v1084 = vpop.f32.mrf.mxu0
        %v1085 = vadd.f32 %v874, %v1084
        %1086 = vmatmul.f32.gmra.mxu0 %v971
        %v1087 = vpop.f32.mrf.mxu0
        %v1088 = vadd.f32 %v874, %v1087
        %1089 = vdwg.mxu0
        %v1090 = vmax.f32 %v995, 0.0
        %v1091 = vmax.f32 %v998, 0.0
        %v1092 = vmax.f32 %v1001, 0.0
        %v1093 = vmax.f32 %v1004, 0.0
        %v1094 = vmax.f32 %v1007, 0.0
        %v1095 = vmax.f32 %v1010, 0.0
        %v1096 = vmax.f32 %v1013, 0.0
        %v1097 = vmax.f32 %v1016, 0.0
        %v1098 = vmax.f32 %v1019, 0.0
        %v1099 = vmax.f32 %v1022, 0.0
        %v1100 = vmax.f32 %v1025, 0.0
        %v1101 = vmax.f32 %v1028, 0.0
        %v1102 = vmax.f32 %v1031, 0.0
        %v1103 = vmax.f32 %v1034, 0.0
        %v1104 = vmax.f32 %v1037, 0.0
        %v1105 = vmax.f32 %v1040, 0.0
        %v1106 = vmax.f32 %v1043, 0.0
        %v1107 = vmax.f32 %v1046, 0.0
        %v1108 = vmax.f32 %v1049, 0.0
        %v1109 = vmax.f32 %v1052, 0.0
        %v1110 = vmax.f32 %v1055, 0.0
        %v1111 = vmax.f32 %v1058, 0.0
        %v1112 = vmax.f32 %v1061, 0.0
        %v1113 = vmax.f32 %v1064, 0.0
        %v1114 = vmax.f32 %v1067, 0.0
        %v1115 = vmax.f32 %v1070, 0.0
        %v1116 = vmax.f32 %v1073, 0.0
        %v1117 = vmax.f32 %v1076, 0.0
        %v1118 = vmax.f32 %v1079, 0.0
        %v1119 = vmax.f32 %v1082, 0.0
        %v1120 = vmax.f32 %v1085, 0.0
        %v1121 = vmax.f32 %v1088, 0.0
        %vm1122 = vcmask 64512
        %1123 = vst.msk [vmem:[#allocation3] sm:$0xff] %vm1122, %v1090
        %1124 = vst.msk [vmem:[#allocation3 + $0x8] sm:$0xff] %vm1122, %v1091
        %1125 = vst.msk [vmem:[#allocation3 + $0x10] sm:$0xff] %vm1122, %v1092
        %1126 = vst.msk [vmem:[#allocation3 + $0x18] sm:$0xff] %vm1122, %v1093
        %1127 = vst.msk [vmem:[#allocation3 + $0x20] sm:$0xff] %vm1122, %v1094
        %1128 = vst.msk [vmem:[#allocation3 + $0x28] sm:$0xff] %vm1122, %v1095
        %1129 = vst.msk [vmem:[#allocation3 + $0x30] sm:$0xff] %vm1122, %v1096
        %1130 = vst.msk [vmem:[#allocation3 + $0x38] sm:$0xff] %vm1122, %v1097
        %1131 = vst.msk [vmem:[#allocation3 + $0x40] sm:$0xff] %vm1122, %v1098
        %1132 = vst.msk [vmem:[#allocation3 + $0x48] sm:$0xff] %vm1122, %v1099
        %1133 = vst.msk [vmem:[#allocation3 + $0x50] sm:$0xff] %vm1122, %v1100
        %1134 = vst.msk [vmem:[#allocation3 + $0x58] sm:$0xff] %vm1122, %v1101
        %1135 = vst.msk [vmem:[#allocation3 + $0x60] sm:$0xff] %vm1122, %v1102
        %1136 = vst.msk [vmem:[#allocation3 + $0x68] sm:$0xff] %vm1122, %v1103
        %1137 = vst.msk [vmem:[#allocation3 + $0x70] sm:$0xff] %vm1122, %v1104
        %1138 = vst.msk [vmem:[#allocation3 + $0x78] sm:$0xff] %vm1122, %v1105
        %1139 = vst.msk [vmem:[#allocation3 + $0x80] sm:$0xff] %vm1122, %v1106
        %1140 = vst.msk [vmem:[#allocation3 + $0x88] sm:$0xff] %vm1122, %v1107
        %1141 = vst.msk [vmem:[#allocation3 + $0x90] sm:$0xff] %vm1122, %v1108
        %1142 = vst.msk [vmem:[#allocation3 + $0x98] sm:$0xff] %vm1122, %v1109
        %1143 = vst.msk [vmem:[#allocation3 + $0xa0] sm:$0xff] %vm1122, %v1110
        %1144 = vst.msk [vmem:[#allocation3 + $0xa8] sm:$0xff] %vm1122, %v1111
        %1145 = vst.msk [vmem:[#allocation3 + $0xb0] sm:$0xff] %vm1122, %v1112
        %1146 = vst.msk [vmem:[#allocation3 + $0xb8] sm:$0xff] %vm1122, %v1113
        %1147 = vst.msk [vmem:[#allocation3 + $0xc0] sm:$0xff] %vm1122, %v1114
        %1148 = vst.msk [vmem:[#allocation3 + $0xc8] sm:$0xff] %vm1122, %v1115
        %1149 = vst.msk [vmem:[#allocation3 + $0xd0] sm:$0xff] %vm1122, %v1116
        %1150 = vst.msk [vmem:[#allocation3 + $0xd8] sm:$0xff] %vm1122, %v1117
        %1151 = vst.msk [vmem:[#allocation3 + $0xe0] sm:$0xff] %vm1122, %v1118
        %1152 = vst.msk [vmem:[#allocation3 + $0xe8] sm:$0xff] %vm1122, %v1119
        %1153 = vst.msk [vmem:[#allocation3 + $0xf0] sm:$0xff] %vm1122, %v1120
        %vm1154 = vcmask 57344
        %1155 = vst.msk [vmem:[#allocation3 + $0xf8] sm:$0x1] %vm1154, %v1121
        %v1156 = vld [vmem:[#allocation3] ss:$3 sm:$0xff]
        %s1157 = scalar_lea.vmem [#allocation3], 24
        %v1158 = vld [vmem:[%s1157] ss:$3 sm:$0xff]
        %s1159 = scalar_lea.vmem [#allocation3], 48
        %v1160 = vld [vmem:[%s1159] ss:$3 sm:$0xff]
        %s1161 = scalar_lea.vmem [#allocation3], 72
        %v1162 = vld [vmem:[%s1161] ss:$3 sm:$0xff]
        %s1163 = scalar_lea.vmem [#allocation3], 96
        %v1164 = vld [vmem:[%s1163] ss:$3 sm:$0xff]
        %s1165 = scalar_lea.vmem [#allocation3], 120
        %v1166 = vld [vmem:[%s1165] ss:$3 sm:$0xff]
        %s1167 = scalar_lea.vmem [#allocation3], 144
        %v1168 = vld [vmem:[%s1167] ss:$3 sm:$0xff]
        %s1169 = scalar_lea.vmem [#allocation3], 168
        %v1170 = vld [vmem:[%s1169] ss:$3 sm:$0xff]
        %s1171 = scalar_lea.vmem [#allocation3], 192
        %v1172 = vld [vmem:[%s1171] ss:$3 sm:$0xff]
        %s1173 = scalar_lea.vmem [#allocation3], 216
        %v1174 = vld [vmem:[%s1173] ss:$3 sm:$0xff]
        %s1175 = scalar_lea.vmem [#allocation3], 240
        %v1176 = vld [vmem:[%s1175] ss:$3 sm:$0x7]
        %s1177 = scalar_lea.vmem [#allocation3], 1
        %v1178 = vld [vmem:[%s1177] ss:$3 sm:$0xff]
        %s1179 = scalar_lea.vmem [#allocation3], 25
        %v1180 = vld [vmem:[%s1179] ss:$3 sm:$0xff]
        %s1181 = scalar_lea.vmem [#allocation3], 49
        %v1182 = vld [vmem:[%s1181] ss:$3 sm:$0xff]
        %s1183 = scalar_lea.vmem [#allocation3], 73
        %v1184 = vld [vmem:[%s1183] ss:$3 sm:$0xff]
        %s1185 = scalar_lea.vmem [#allocation3], 97
        %v1186 = vld [vmem:[%s1185] ss:$3 sm:$0xff]
        %s1187 = scalar_lea.vmem [#allocation3], 121
        %v1188 = vld [vmem:[%s1187] ss:$3 sm:$0xff]
        %s1189 = scalar_lea.vmem [#allocation3], 145
        %v1190 = vld [vmem:[%s1189] ss:$3 sm:$0xff]
        %s1191 = scalar_lea.vmem [#allocation3], 169
        %v1192 = vld [vmem:[%s1191] ss:$3 sm:$0xff]
        %s1193 = scalar_lea.vmem [#allocation3], 193
        %v1194 = vld [vmem:[%s1193] ss:$3 sm:$0xff]
        %s1195 = scalar_lea.vmem [#allocation3], 217
        %v1196 = vld [vmem:[%s1195] ss:$3 sm:$0xff]
        %s1197 = scalar_lea.vmem [#allocation3], 241
        %v1198 = vld [vmem:[%s1197] ss:$3 sm:$0x7]
        %v1199 = vmax.f32 %v1156, %v1178
        %v1200 = vmax.f32 %v1158, %v1180
        %v1201 = vmax.f32 %v1160, %v1182
        %v1202 = vmax.f32 %v1162, %v1184
        %v1203 = vmax.f32 %v1164, %v1186
        %v1204 = vmax.f32 %v1166, %v1188
        %v1205 = vmax.f32 %v1168, %v1190
        %v1206 = vmax.f32 %v1170, %v1192
        %v1207 = vmax.f32 %v1172, %v1194
        %v1208 = vmax.f32 %v1174, %v1196
        %v1209 = vmax.f32 %v1176, %v1198
        %s1210 = scalar_lea.vmem [#allocation3], 2
        %v1211 = vld [vmem:[%s1210] ss:$3 sm:$0xff]
        %s1212 = scalar_lea.vmem [#allocation3], 26
        %v1213 = vld [vmem:[%s1212] ss:$3 sm:$0xff]
        %s1214 = scalar_lea.vmem [#allocation3], 50
        %v1215 = vld [vmem:[%s1214] ss:$3 sm:$0xff]
        %s1216 = scalar_lea.vmem [#allocation3], 74
        %v1217 = vld [vmem:[%s1216] ss:$3 sm:$0xff]
        %s1218 = scalar_lea.vmem [#allocation3], 98
        %v1219 = vld [vmem:[%s1218] ss:$3 sm:$0xff]
        %s1220 = scalar_lea.vmem [#allocation3], 122
        %v1221 = vld [vmem:[%s1220] ss:$3 sm:$0xff]
        %s1222 = scalar_lea.vmem [#allocation3], 146
        %v1223 = vld [vmem:[%s1222] ss:$3 sm:$0xff]
        %s1224 = scalar_lea.vmem [#allocation3], 170
        %v1225 = vld [vmem:[%s1224] ss:$3 sm:$0xff]
        %s1226 = scalar_lea.vmem [#allocation3], 194
        %v1227 = vld [vmem:[%s1226] ss:$3 sm:$0xff]
        %s1228 = scalar_lea.vmem [#allocation3], 218
        %v1229 = vld [vmem:[%s1228] ss:$3 sm:$0xff]
        %s1230 = scalar_lea.vmem [#allocation3], 242
        %v1231 = vld [vmem:[%s1230] ss:$3 sm:$0x7]
        %v1232 = vmax.f32 %v1199, %v1211
        %v1233 = vmax.f32 %v1200, %v1213
        %v1234 = vmax.f32 %v1201, %v1215
        %v1235 = vmax.f32 %v1202, %v1217
        %v1236 = vmax.f32 %v1203, %v1219
        %v1237 = vmax.f32 %v1204, %v1221
        %v1238 = vmax.f32 %v1205, %v1223
        %v1239 = vmax.f32 %v1206, %v1225
        %v1240 = vmax.f32 %v1207, %v1227
        %v1241 = vmax.f32 %v1208, %v1229
        %v1242 = vmax.f32 %v1209, %v1231
        %1243 = vst.msk [vmem:[#allocation4] sm:$0xff] %vm1122, %v1232
        %1244 = vst.msk [vmem:[#allocation4 + $0x8] sm:$0xff] %vm1122, %v1233
        %1245 = vst.msk [vmem:[#allocation4 + $0x10] sm:$0xff] %vm1122, %v1234
        %1246 = vst.msk [vmem:[#allocation4 + $0x18] sm:$0xff] %vm1122, %v1235
        %1247 = vst.msk [vmem:[#allocation4 + $0x20] sm:$0xff] %vm1122, %v1236
        %1248 = vst.msk [vmem:[#allocation4 + $0x28] sm:$0xff] %vm1122, %v1237
        %1249 = vst.msk [vmem:[#allocation4 + $0x30] sm:$0xff] %vm1122, %v1238
        %1250 = vst.msk [vmem:[#allocation4 + $0x38] sm:$0xff] %vm1122, %v1239
        %1251 = vst.msk [vmem:[#allocation4 + $0x40] sm:$0xff] %vm1122, %v1240
        %1252 = vst.msk [vmem:[#allocation4 + $0x48] sm:$0xff] %vm1122, %v1241
        %vm1253 = vcmask 59392
        %1254 = vst.msk [vmem:[#allocation4 + $0x50] sm:$0x7] %vm1253, %v1242
        %v1255 = vld [vmem:[#allocation4] sm:$0xff]
        %v1256 = vld [vmem:[#allocation4 + $0x8] sm:$0xff]
        %v1257 = vld [vmem:[#allocation4 + $0x10] sm:$0xff]
        %v1258 = vld [vmem:[#allocation4 + $0x18] sm:$0xff]
        %v1259 = vld [vmem:[#allocation4 + $0x20] sm:$0xff]
        %v1260 = vld [vmem:[#allocation4 + $0x28] sm:$0xff]
        %v1261 = vld [vmem:[#allocation4 + $0x30] sm:$0xff]
        %v1262 = vld [vmem:[#allocation4 + $0x38] sm:$0xff]
        %v1263 = vld [vmem:[#allocation4 + $0x40] sm:$0xff]
        %v1264 = vld [vmem:[#allocation4 + $0x48] sm:$0xff]
        %v1265 = vld [vmem:[#allocation4 + $0x50] sm:$0x1]
        %1266 = vst.msk [vmem:[#allocation5] sm:$0xff] %vm1122, %v1255
        %1267 = vst.msk [vmem:[#allocation5 + $0x8] sm:$0xff] %vm1122, %v1256
        %1268 = vst.msk [vmem:[#allocation5 + $0x10] sm:$0xff] %vm1122, %v1257
        %1269 = vst.msk [vmem:[#allocation5 + $0x18] sm:$0xff] %vm1122, %v1258
        %1270 = vst.msk [vmem:[#allocation5 + $0x20] sm:$0xff] %vm1122, %v1259
        %1271 = vst.msk [vmem:[#allocation5 + $0x28] sm:$0xff] %vm1122, %v1260
        %1272 = vst.msk [vmem:[#allocation5 + $0x30] sm:$0xff] %vm1122, %v1261
        %1273 = vst.msk [vmem:[#allocation5 + $0x38] sm:$0xff] %vm1122, %v1262
        %1274 = vst.msk [vmem:[#allocation5 + $0x40] sm:$0xff] %vm1122, %v1263
        %1275 = vst.msk [vmem:[#allocation5 + $0x48] sm:$0xff] %vm1122, %v1264
        %1276 = vst.msk [vmem:[#allocation5 + $0x50] sm:$0x1] %vm1154, %v1265
        %v1277 = vld [vmem:[#allocation4 + $0x1] sm:$0xff]
        %v1278 = vld [vmem:[#allocation4 + $0x9] sm:$0xff]
        %v1279 = vld [vmem:[#allocation4 + $0x11] sm:$0xff]
        %v1280 = vld [vmem:[#allocation4 + $0x19] sm:$0xff]
        %v1281 = vld [vmem:[#allocation4 + $0x21] sm:$0xff]
        %v1282 = vld [vmem:[#allocation4 + $0x29] sm:$0xff]
        %v1283 = vld [vmem:[#allocation4 + $0x31] sm:$0xff]
        %v1284 = vld [vmem:[#allocation4 + $0x39] sm:$0xff]
        %v1285 = vld [vmem:[#allocation4 + $0x41] sm:$0xff]
        %v1286 = vld [vmem:[#allocation4 + $0x49] sm:$0xff]
        %v1287 = vld [vmem:[#allocation4 + $0x51] sm:$0x1]
        %1299 = vrot.lane.b32.xlu0 %v1277, 8
        %v1300 = vpop.permute.xlu0 %1299
        %1301 = vrot.lane.b32.xlu0 %v1278, 8
        %v1302 = vpop.permute.xlu0 %1301
        %1303 = vrot.lane.b32.xlu0 %v1279, 8
        %v1304 = vpop.permute.xlu0 %1303
        %1305 = vrot.lane.b32.xlu0 %v1280, 8
        %v1306 = vpop.permute.xlu0 %1305
        %1307 = vrot.lane.b32.xlu0 %v1281, 8
        %v1308 = vpop.permute.xlu0 %1307
        %1309 = vrot.lane.b32.xlu0 %v1282, 8
        %v1310 = vpop.permute.xlu0 %1309
        %1311 = vrot.lane.b32.xlu0 %v1283, 8
        %v1312 = vpop.permute.xlu0 %1311
        %1313 = vrot.lane.b32.xlu0 %v1284, 8
        %v1314 = vpop.permute.xlu0 %1313
        %1315 = vrot.lane.b32.xlu0 %v1285, 8
        %v1316 = vpop.permute.xlu0 %1315
        %1317 = vrot.lane.b32.xlu0 %v1286, 8
        %v1318 = vpop.permute.xlu0 %1317
        %1319 = vrot.lane.b32.xlu0 %v1287, 8
        %v1320 = vpop.permute.xlu0 %1319
        %vm1332 = vcmask 130112
        %1333 = vst.msk [vmem:[#allocation5] sm:$0xff] %vm1332, %v1300
        %1334 = vst.msk [vmem:[#allocation5 + $0x8] sm:$0xff] %vm1332, %v1302
        %1335 = vst.msk [vmem:[#allocation5 + $0x10] sm:$0xff] %vm1332, %v1304
        %1336 = vst.msk [vmem:[#allocation5 + $0x18] sm:$0xff] %vm1332, %v1306
        %1337 = vst.msk [vmem:[#allocation5 + $0x20] sm:$0xff] %vm1332, %v1308
        %1338 = vst.msk [vmem:[#allocation5 + $0x28] sm:$0xff] %vm1332, %v1310
        %1339 = vst.msk [vmem:[#allocation5 + $0x30] sm:$0xff] %vm1332, %v1312
        %1340 = vst.msk [vmem:[#allocation5 + $0x38] sm:$0xff] %vm1332, %v1314
        %1341 = vst.msk [vmem:[#allocation5 + $0x40] sm:$0xff] %vm1332, %v1316
        %1342 = vst.msk [vmem:[#allocation5 + $0x48] sm:$0xff] %vm1332, %v1318
        %vm1343 = vcmask 122944
        %1344 = vst.msk [vmem:[#allocation5 + $0x50] sm:$0x1] %vm1343, %v1320
        %v1345 = vld [vmem:[#allocation4 + $0x2] sm:$0xff]
        %v1346 = vld [vmem:[#allocation4 + $0xa] sm:$0xff]
        %v1347 = vld [vmem:[#allocation4 + $0x12] sm:$0xff]
        %v1348 = vld [vmem:[#allocation4 + $0x1a] sm:$0xff]
        %v1349 = vld [vmem:[#allocation4 + $0x22] sm:$0xff]
        %v1350 = vld [vmem:[#allocation4 + $0x2a] sm:$0xff]
        %v1351 = vld [vmem:[#allocation4 + $0x32] sm:$0xff]
        %v1352 = vld [vmem:[#allocation4 + $0x3a] sm:$0xff]
        %v1353 = vld [vmem:[#allocation4 + $0x42] sm:$0xff]
        %v1354 = vld [vmem:[#allocation4 + $0x4a] sm:$0xff]
        %v1355 = vld [vmem:[#allocation4 + $0x52] sm:$0x1]
        %1367 = vrot.lane.b32.xlu0 %v1345, 16
        %v1368 = vpop.permute.xlu0 %1367
        %1369 = vrot.lane.b32.xlu0 %v1346, 16
        %v1370 = vpop.permute.xlu0 %1369
        %1371 = vrot.lane.b32.xlu0 %v1347, 16
        %v1372 = vpop.permute.xlu0 %1371
        %1373 = vrot.lane.b32.xlu0 %v1348, 16
        %v1374 = vpop.permute.xlu0 %1373
        %1375 = vrot.lane.b32.xlu0 %v1349, 16
        %v1376 = vpop.permute.xlu0 %1375
        %1377 = vrot.lane.b32.xlu0 %v1350, 16
        %v1378 = vpop.permute.xlu0 %1377
        %1379 = vrot.lane.b32.xlu0 %v1351, 16
        %v1380 = vpop.permute.xlu0 %1379
        %1381 = vrot.lane.b32.xlu0 %v1352, 16
        %v1382 = vpop.permute.xlu0 %1381
        %1383 = vrot.lane.b32.xlu0 %v1353, 16
        %v1384 = vpop.permute.xlu0 %1383
        %1385 = vrot.lane.b32.xlu0 %v1354, 16
        %v1386 = vpop.permute.xlu0 %1385
        %1387 = vrot.lane.b32.xlu0 %v1355, 16
        %v1388 = vpop.permute.xlu0 %1387
        %vm1400 = vcmask 195712
        %1401 = vst.msk [vmem:[#allocation5] sm:$0xff] %vm1400, %v1368
        %1402 = vst.msk [vmem:[#allocation5 + $0x8] sm:$0xff] %vm1400, %v1370
        %1403 = vst.msk [vmem:[#allocation5 + $0x10] sm:$0xff] %vm1400, %v1372
        %1404 = vst.msk [vmem:[#allocation5 + $0x18] sm:$0xff] %vm1400, %v1374
        %1405 = vst.msk [vmem:[#allocation5 + $0x20] sm:$0xff] %vm1400, %v1376
        %1406 = vst.msk [vmem:[#allocation5 + $0x28] sm:$0xff] %vm1400, %v1378
        %1407 = vst.msk [vmem:[#allocation5 + $0x30] sm:$0xff] %vm1400, %v1380
        %1408 = vst.msk [vmem:[#allocation5 + $0x38] sm:$0xff] %vm1400, %v1382
        %1409 = vst.msk [vmem:[#allocation5 + $0x40] sm:$0xff] %vm1400, %v1384
        %1410 = vst.msk [vmem:[#allocation5 + $0x48] sm:$0xff] %vm1400, %v1386
        %vm1411 = vcmask 188544
        %1412 = vst.msk [vmem:[#allocation5 + $0x50] sm:$0x1] %vm1411, %v1388
        %v1413 = vld [vmem:[#allocation5] sm:$0xff]
        %v1414 = vld [vmem:[#allocation5 + $0x8] sm:$0xff]
        %v1415 = vld [vmem:[#allocation5 + $0x10] sm:$0xff]
        %v1416 = vld [vmem:[#allocation5 + $0x18] sm:$0xff]
        %v1417 = vld [vmem:[#allocation5 + $0x20] sm:$0xff]
        %v1418 = vld [vmem:[#allocation5 + $0x28] sm:$0xff]
        %v1419 = vld [vmem:[#allocation5 + $0x30] sm:$0xff]
        %v1420 = vld [vmem:[#allocation5 + $0x38] sm:$0xff]
        %v1421 = vld [vmem:[#allocation5 + $0x40] sm:$0xff]
        %v1422 = vld [vmem:[#allocation5 + $0x48] sm:$0xff]
        %v1423 = vld [vmem:[#allocation5 + $0x50] sm:$0x1]
        %v1424 = vld [vmem:[%s3] sm:$0xff]
        %v1425 = vld [vmem:[%s3 + $0x8] sm:$0xff]
        %v1426 = vld [vmem:[%s3 + $0x10] sm:$0xff]
        %v1427 = vld [vmem:[%s4] sm:$0x1]
        %v1429 = vperm.slane %v1427, 0
        %vm1431 = vcmask 195584
        %v1433 = vsel %vm1431, %v1413, 0
        %v1436 = vsel %vm1431, %v1414, 0
        %v1439 = vsel %vm1431, %v1415, 0
        %v1442 = vsel %vm1431, %v1416, 0
        %v1445 = vsel %vm1431, %v1417, 0
        %v1448 = vsel %vm1431, %v1418, 0
        %v1451 = vsel %vm1431, %v1419, 0
        %v1454 = vsel %vm1431, %v1420, 0
        %v1457 = vsel %vm1431, %v1421, 0
        %v1460 = vsel %vm1431, %v1422, 0
        %v1463 = vsel %vm1431, %v1423, 0
        %1465 = vmatpush.msra.mxu0 0.0
        %1466 = vmatpush.msra.mxu0 0.0
        %1467 = vmatpush.msra.mxu0 0.0
        %1468 = vmatpush.msra.mxu0 0.0
        %1469 = vmatpush.msra.mxu0 0.0
        %1470 = vmatpush.msra.mxu0 0.0
        %1471 = vmatpush.msra.mxu0 0.0
        %1472 = vmatpush.msra.mxu0 0.0
        %1473 = vmatpush.msra.mxu0 0.0
        %1474 = vmatpush.msra.mxu0 0.0
        %1475 = vmatpush.msra.mxu0 0.0
        %1476 = vmatpush.msra.mxu0 0.0
        %1477 = vmatpush.msra.mxu0 0.0
        %1478 = vmatpush.msra.mxu0 %v1426
        %1479 = vmatpush.msra.mxu0 %v1425
        %1480 = vmatpush.msra.mxu0 %v1424
        %1481 = vmatmul.f32.gmra.mxu0 %v1433
        %v1482 = vpop.f32.mrf.mxu0
        %v1483 = vadd.f32 %v1429, %v1482
        %1484 = vmatmul.f32.gmra.mxu0 %v1436
        %v1485 = vpop.f32.mrf.mxu0
        %v1486 = vadd.f32 %v1429, %v1485
        %1487 = vmatmul.f32.gmra.mxu0 %v1439
        %v1488 = vpop.f32.mrf.mxu0
        %v1489 = vadd.f32 %v1429, %v1488
        %1490 = vmatmul.f32.gmra.mxu0 %v1442
        %v1491 = vpop.f32.mrf.mxu0
        %v1492 = vadd.f32 %v1429, %v1491
        %1493 = vmatmul.f32.gmra.mxu0 %v1445
        %v1494 = vpop.f32.mrf.mxu0
        %v1495 = vadd.f32 %v1429, %v1494
        %1496 = vmatmul.f32.gmra.mxu0 %v1448
        %v1497 = vpop.f32.mrf.mxu0
        %v1498 = vadd.f32 %v1429, %v1497
        %1499 = vmatmul.f32.gmra.mxu0 %v1451
        %v1500 = vpop.f32.mrf.mxu0
        %v1501 = vadd.f32 %v1429, %v1500
        %1502 = vmatmul.f32.gmra.mxu0 %v1454
        %v1503 = vpop.f32.mrf.mxu0
        %v1504 = vadd.f32 %v1429, %v1503
        %1505 = vmatmul.f32.gmra.mxu0 %v1457
        %v1506 = vpop.f32.mrf.mxu0
        %v1507 = vadd.f32 %v1429, %v1506
        %1508 = vmatmul.f32.gmra.mxu0 %v1460
        %v1509 = vpop.f32.mrf.mxu0
        %v1510 = vadd.f32 %v1429, %v1509
        %1511 = vmatmul.f32.gmra.mxu0 %v1463
        %v1512 = vpop.f32.mrf.mxu0
        %v1513 = vadd.f32 %v1429, %v1512
        %1514 = vdwg.mxu0
        %v1515 = vmax.f32 %v1483, 0.0
        %v1516 = vmax.f32 %v1486, 0.0
        %v1517 = vmax.f32 %v1489, 0.0
        %v1518 = vmax.f32 %v1492, 0.0
        %v1519 = vmax.f32 %v1495, 0.0
        %v1520 = vmax.f32 %v1498, 0.0
        %v1521 = vmax.f32 %v1501, 0.0
        %v1522 = vmax.f32 %v1504, 0.0
        %v1523 = vmax.f32 %v1507, 0.0
        %v1524 = vmax.f32 %v1510, 0.0
        %v1525 = vmax.f32 %v1513, 0.0
        %vm1526 = vcmask 130048
        %1527 = vst.msk [vmem:[#allocation6] sm:$0xff] %vm1526, %v1515
        %1528 = vst.msk [vmem:[#allocation6 + $0x8] sm:$0xff] %vm1526, %v1516
        %1529 = vst.msk [vmem:[#allocation6 + $0x10] sm:$0xff] %vm1526, %v1517
        %1530 = vst.msk [vmem:[#allocation6 + $0x18] sm:$0xff] %vm1526, %v1518
        %1531 = vst.msk [vmem:[#allocation6 + $0x20] sm:$0xff] %vm1526, %v1519
        %1532 = vst.msk [vmem:[#allocation6 + $0x28] sm:$0xff] %vm1526, %v1520
        %1533 = vst.msk [vmem:[#allocation6 + $0x30] sm:$0xff] %vm1526, %v1521
        %1534 = vst.msk [vmem:[#allocation6 + $0x38] sm:$0xff] %vm1526, %v1522
        %1535 = vst.msk [vmem:[#allocation6 + $0x40] sm:$0xff] %vm1526, %v1523
        %1536 = vst.msk [vmem:[#allocation6 + $0x48] sm:$0xff] %vm1526, %v1524
        %vm1537 = vcmask 122880
        %1538 = vst.msk [vmem:[#allocation6 + $0x50] sm:$0x1] %vm1537, %v1525
        %v1539 = vld [vmem:[#allocation6] ss:$3 sm:$0xff]
        %s1540 = scalar_lea.vmem [#allocation6], 24
        %v1541 = vld [vmem:[%s1540] ss:$3 sm:$0xff]
        %s1542 = scalar_lea.vmem [#allocation6], 48
        %v1543 = vld [vmem:[%s1542] ss:$3 sm:$0xff]
        %s1544 = scalar_lea.vmem [#allocation6], 72
        %v1545 = vld [vmem:[%s1544] ss:$3 sm:$0x7]
        %s1546 = scalar_lea.vmem [#allocation6], 1
        %v1547 = vld [vmem:[%s1546] ss:$3 sm:$0xff]
        %s1548 = scalar_lea.vmem [#allocation6], 25
        %v1549 = vld [vmem:[%s1548] ss:$3 sm:$0xff]
        %s1550 = scalar_lea.vmem [#allocation6], 49
        %v1551 = vld [vmem:[%s1550] ss:$3 sm:$0xff]
        %s1552 = scalar_lea.vmem [#allocation6], 73
        %v1553 = vld [vmem:[%s1552] ss:$3 sm:$0x7]
        %v1554 = vmax.f32 %v1539, %v1547
        %v1555 = vmax.f32 %v1541, %v1549
        %v1556 = vmax.f32 %v1543, %v1551
        %v1557 = vmax.f32 %v1545, %v1553
        %s1558 = scalar_lea.vmem [#allocation6], 2
        %v1559 = vld [vmem:[%s1558] ss:$3 sm:$0xff]
        %s1560 = scalar_lea.vmem [#allocation6], 26
        %v1561 = vld [vmem:[%s1560] ss:$3 sm:$0xff]
        %s1562 = scalar_lea.vmem [#allocation6], 50
        %v1563 = vld [vmem:[%s1562] ss:$3 sm:$0xff]
        %s1564 = scalar_lea.vmem [#allocation6], 74
        %v1565 = vld [vmem:[%s1564] ss:$3 sm:$0x7]
        %v1566 = vmax.f32 %v1554, %v1559
        %v1567 = vmax.f32 %v1555, %v1561
        %v1568 = vmax.f32 %v1556, %v1563
        %v1569 = vmax.f32 %v1557, %v1565
        %1570 = vst.msk [vmem:[#allocation7] sm:$0xff] %vm1526, %v1566
        %1571 = vst.msk [vmem:[#allocation7 + $0x8] sm:$0xff] %vm1526, %v1567
        %1572 = vst.msk [vmem:[#allocation7 + $0x10] sm:$0xff] %vm1526, %v1568
        %vm1573 = vcmask 124928
        %1574 = vst.msk [vmem:[#allocation7 + $0x18] sm:$0x7] %vm1573, %v1569
        %v1575 = vld [vmem:[#allocation7] sm:$0x1]
        %v1576 = vlaneseq
        %vm1577 = vcmp.ge.s32.totalorder %v1576, 0
        %vm1578 = vcmp.lt.s32.totalorder %v1576, 16
        %vm1579 = vmand %vm1577, %vm1578
        %1580 = vst.msk [vmem:[#allocation8] sm:$0x1] %vm1579, %v1575
        %v1581 = vld [vmem:[#allocation7 + $0x1] sm:$0x1]
        %1583 = vrot.lane.b32.xlu0 %v1581, 16
        %v1584 = vpop.permute.xlu0 %1583
        %vm1586 = vcmp.ge.s32.totalorder %v1576, 16
        %vm1587 = vcmp.lt.s32.totalorder %v1576, 32
        %vm1588 = vmand %vm1586, %vm1587
        %1589 = vst.msk [vmem:[#allocation8] sm:$0x1] %vm1588, %v1584
        %v1590 = vld [vmem:[#allocation7 + $0x2] sm:$0x1]
        %1592 = vrot.lane.b32.xlu0 %v1590, 32
        %v1593 = vpop.permute.xlu0 %1592
        %vm1595 = vcmp.ge.s32.totalorder %v1576, 32
        %vm1596 = vcmp.lt.s32.totalorder %v1576, 48
        %vm1597 = vmand %vm1595, %vm1596
        %1598 = vst.msk [vmem:[#allocation8] sm:$0x1] %vm1597, %v1593
        %v1599 = vld [vmem:[#allocation7 + $0x3] sm:$0x1]
        %1601 = vrot.lane.b32.xlu0 %v1599, 48
        %v1602 = vpop.permute.xlu0 %1601
        %vm1604 = vcmp.ge.s32.totalorder %v1576, 48
        %vm1605 = vcmp.lt.s32.totalorder %v1576, 64
        %vm1606 = vmand %vm1604, %vm1605
        %1607 = vst.msk [vmem:[#allocation8] sm:$0x1] %vm1606, %v1602
        %v1608 = vld [vmem:[#allocation7 + $0x4] sm:$0x1]
        %1610 = vrot.lane.b32.xlu0 %v1608, 64
        %v1611 = vpop.permute.xlu0 %1610
        %vm1613 = vcmp.ge.s32.totalorder %v1576, 64
        %vm1614 = vcmp.lt.s32.totalorder %v1576, 80
        %vm1615 = vmand %vm1613, %vm1614
        %1616 = vst.msk [vmem:[#allocation8] sm:$0x1] %vm1615, %v1611
        %v1617 = vld [vmem:[#allocation7 + $0x5] sm:$0x1]
        %1619 = vrot.lane.b32.xlu0 %v1617, 80
        %v1620 = vpop.permute.xlu0 %1619
        %vm1622 = vcmp.ge.s32.totalorder %v1576, 80
        %vm1623 = vcmp.lt.s32.totalorder %v1576, 96
        %vm1624 = vmand %vm1622, %vm1623
        %1625 = vst.msk [vmem:[#allocation8] sm:$0x1] %vm1624, %v1620
        %v1626 = vld [vmem:[#allocation7 + $0x6] sm:$0x1]
        %1628 = vrot.lane.b32.xlu0 %v1626, 96
        %v1629 = vpop.permute.xlu0 %1628
        %vm1631 = vcmp.ge.s32.totalorder %v1576, 96
        %vm1632 = vcmp.lt.s32.totalorder %v1576, 112
        %vm1633 = vmand %vm1631, %vm1632
        %1634 = vst.msk [vmem:[#allocation8] sm:$0x1] %vm1633, %v1629
        %v1635 = vld [vmem:[#allocation7 + $0x7] sm:$0x1]
        %1637 = vrot.lane.b32.xlu0 %v1635, 112
        %v1638 = vpop.permute.xlu0 %1637
        %vm1640 = vcmp.ge.s32.totalorder %v1576, 112
        %vm1641 = vcmp.lt.s32.totalorder %v1576, 128
        %vm1642 = vmand %vm1640, %vm1641
        %1643 = vst.msk [vmem:[#allocation8] sm:$0x1] %vm1642, %v1638
        %v1644 = vld [vmem:[#allocation7 + $0x8] sm:$0x1]
        %1645 = vst.msk [vmem:[#allocation8 + $0x1] sm:$0x1] %vm1579, %v1644
        %v1646 = vld [vmem:[#allocation7 + $0x9] sm:$0x1]
        %1648 = vrot.lane.b32.xlu0 %v1646, 16
        %v1649 = vpop.permute.xlu0 %1648
        %1651 = vst.msk [vmem:[#allocation8 + $0x1] sm:$0x1] %vm1588, %v1649
        %v1652 = vld [vmem:[#allocation7 + $0xa] sm:$0x1]
        %1654 = vrot.lane.b32.xlu0 %v1652, 32
        %v1655 = vpop.permute.xlu0 %1654
        %1657 = vst.msk [vmem:[#allocation8 + $0x1] sm:$0x1] %vm1597, %v1655
        %v1658 = vld [vmem:[#allocation7 + $0xb] sm:$0x1]
        %1660 = vrot.lane.b32.xlu0 %v1658, 48
        %v1661 = vpop.permute.xlu0 %1660
        %1663 = vst.msk [vmem:[#allocation8 + $0x1] sm:$0x1] %vm1606, %v1661
        %v1664 = vld [vmem:[#allocation7 + $0xc] sm:$0x1]
        %1666 = vrot.lane.b32.xlu0 %v1664, 64
        %v1667 = vpop.permute.xlu0 %1666
        %1669 = vst.msk [vmem:[#allocation8 + $0x1] sm:$0x1] %vm1615, %v1667
        %v1670 = vld [vmem:[#allocation7 + $0xd] sm:$0x1]
        %1672 = vrot.lane.b32.xlu0 %v1670, 80
        %v1673 = vpop.permute.xlu0 %1672
        %1675 = vst.msk [vmem:[#allocation8 + $0x1] sm:$0x1] %vm1624, %v1673
        %v1676 = vld [vmem:[#allocation7 + $0xe] sm:$0x1]
        %1678 = vrot.lane.b32.xlu0 %v1676, 96
        %v1679 = vpop.permute.xlu0 %1678
        %1681 = vst.msk [vmem:[#allocation8 + $0x1] sm:$0x1] %vm1633, %v1679
        %v1682 = vld [vmem:[#allocation7 + $0xf] sm:$0x1]
        %1684 = vrot.lane.b32.xlu0 %v1682, 112
        %v1685 = vpop.permute.xlu0 %1684
        %1687 = vst.msk [vmem:[#allocation8 + $0x1] sm:$0x1] %vm1642, %v1685
        %v1688 = vld [vmem:[#allocation7 + $0x10] sm:$0x1]
        %1689 = vst.msk [vmem:[#allocation8 + $0x2] sm:$0x1] %vm1579, %v1688
        %v1690 = vld [vmem:[#allocation7 + $0x11] sm:$0x1]
        %1692 = vrot.lane.b32.xlu0 %v1690, 16
        %v1693 = vpop.permute.xlu0 %1692
        %1695 = vst.msk [vmem:[#allocation8 + $0x2] sm:$0x1] %vm1588, %v1693
        %v1696 = vld [vmem:[#allocation7 + $0x12] sm:$0x1]
        %1698 = vrot.lane.b32.xlu0 %v1696, 32
        %v1699 = vpop.permute.xlu0 %1698
        %1701 = vst.msk [vmem:[#allocation8 + $0x2] sm:$0x1] %vm1597, %v1699
        %v1702 = vld [vmem:[#allocation7 + $0x13] sm:$0x1]
        %1704 = vrot.lane.b32.xlu0 %v1702, 48
        %v1705 = vpop.permute.xlu0 %1704
        %1707 = vst.msk [vmem:[#allocation8 + $0x2] sm:$0x1] %vm1606, %v1705
        %v1708 = vld [vmem:[#allocation7 + $0x14] sm:$0x1]
        %1710 = vrot.lane.b32.xlu0 %v1708, 64
        %v1711 = vpop.permute.xlu0 %1710
        %1713 = vst.msk [vmem:[#allocation8 + $0x2] sm:$0x1] %vm1615, %v1711
        %v1714 = vld [vmem:[#allocation7 + $0x15] sm:$0x1]
        %1716 = vrot.lane.b32.xlu0 %v1714, 80
        %v1717 = vpop.permute.xlu0 %1716
        %1719 = vst.msk [vmem:[#allocation8 + $0x2] sm:$0x1] %vm1624, %v1717
        %v1720 = vld [vmem:[#allocation7 + $0x16] sm:$0x1]
        %1722 = vrot.lane.b32.xlu0 %v1720, 96
        %v1723 = vpop.permute.xlu0 %1722
        %1725 = vst.msk [vmem:[#allocation8 + $0x2] sm:$0x1] %vm1633, %v1723
        %v1726 = vld [vmem:[#allocation7 + $0x17] sm:$0x1]
        %1728 = vrot.lane.b32.xlu0 %v1726, 112
        %v1729 = vpop.permute.xlu0 %1728
        %1731 = vst.msk [vmem:[#allocation8 + $0x2] sm:$0x1] %vm1642, %v1729
        %v1732 = vld [vmem:[#allocation7 + $0x18] sm:$0x1]
        %1733 = vst.msk [vmem:[#allocation8 + $0x3] sm:$0x1] %vm1579, %v1732
        %v1734 = vld [vmem:[#allocation7 + $0x19] sm:$0x1]
        %1736 = vrot.lane.b32.xlu0 %v1734, 16
        %v1737 = vpop.permute.xlu0 %1736
        %1739 = vst.msk [vmem:[#allocation8 + $0x3] sm:$0x1] %vm1588, %v1737
        %v1740 = vld [vmem:[#allocation7 + $0x1a] sm:$0x1]
        %1742 = vrot.lane.b32.xlu0 %v1740, 32
        %v1743 = vpop.permute.xlu0 %1742
        %1745 = vst.msk [vmem:[#allocation8 + $0x3] sm:$0x1] %vm1597, %v1743
        %v1746 = vld [vmem:[#allocation8] sm:$0xf]
        %v1747 = vld [vmem:[%s5] sm:$0xff]
        %v1748 = vld [vmem:[%s5 + $0x8] sm:$0xff]
        %v1749 = vld [vmem:[%s5 + $0x10] sm:$0xff]
        %v1750 = vld [vmem:[%s5 + $0x18] sm:$0xff]
        %v1751 = vld [vmem:[%s5 + $0x20] sm:$0xff]
        %v1752 = vld [vmem:[%s5 + $0x28] sm:$0xff]
        %v1753 = vld [vmem:[%s5 + $0x30] sm:$0xff]
        %v1754 = vld [vmem:[%s5 + $0x38] sm:$0xff]
        %v1755 = vld [vmem:[%s5 + $0x40] sm:$0xff]
        %v1756 = vld [vmem:[%s5 + $0x48] sm:$0xff]
        %v1757 = vld [vmem:[%s5 + $0x50] sm:$0xff]
        %v1758 = vld [vmem:[%s5 + $0x58] sm:$0xff]
        %v1759 = vld [vmem:[%s5 + $0x60] sm:$0xff]
        %v1760 = vld [vmem:[%s5 + $0x68] sm:$0xff]
        %v1761 = vld [vmem:[%s5 + $0x70] sm:$0xff]
        %v1762 = vld [vmem:[%s5 + $0x78] sm:$0xff]
        %v1763 = vld [vmem:[%s5 + $0x80] sm:$0xff]
        %v1764 = vld [vmem:[%s5 + $0x88] sm:$0xff]
        %v1765 = vld [vmem:[%s5 + $0x90] sm:$0xff]
        %v1766 = vld [vmem:[%s5 + $0x98] sm:$0xff]
        %v1767 = vld [vmem:[%s5 + $0xa0] sm:$0xff]
        %v1768 = vld [vmem:[%s5 + $0xa8] sm:$0xff]
        %v1769 = vld [vmem:[%s5 + $0xb0] sm:$0xff]
        %v1770 = vld [vmem:[%s5 + $0xb8] sm:$0xff]
        %v1771 = vld [vmem:[%s5 + $0xc0] sm:$0xff]
        %v1772 = vld [vmem:[%s5 + $0xc8] sm:$0xff]
        %v1773 = vld [vmem:[%s5 + $0xd0] sm:$0xff]
        %v1774 = vld [vmem:[%s5 + $0xd8] sm:$0xff]
        %v1775 = vld [vmem:[%s5 + $0xe0] sm:$0xff]
        %v1776 = vld [vmem:[%s5 + $0xe8] sm:$0xff]
        %v1777 = vld [vmem:[%s5 + $0xf0] sm:$0xff]
        %v1778 = vld [vmem:[%s5 + $0xf8] sm:$0xff]
        %v1779 = vld [vmem:[%s5 + $0x100] sm:$0xff]
        %v1780 = vld [vmem:[%s5 + $0x108] sm:$0xff]
        %v1781 = vld [vmem:[%s5 + $0x110] sm:$0xff]
        %v1782 = vld [vmem:[%s5 + $0x118] sm:$0xff]
        %v1783 = vld [vmem:[%s5 + $0x120] sm:$0xff]
        %v1784 = vld [vmem:[%s5 + $0x128] sm:$0xff]
        %v1785 = vld [vmem:[%s5 + $0x130] sm:$0xff]
        %v1786 = vld [vmem:[%s5 + $0x138] sm:$0xff]
        %v1787 = vld [vmem:[%s5 + $0x140] sm:$0xff]
        %v1788 = vld [vmem:[%s5 + $0x148] sm:$0xff]
        %v1789 = vld [vmem:[%s5 + $0x150] sm:$0xff]
        %v1790 = vld [vmem:[%s5 + $0x158] sm:$0xff]
        %v1791 = vld [vmem:[%s5 + $0x160] sm:$0xff]
        %v1792 = vld [vmem:[%s5 + $0x168] sm:$0xff]
        %v1793 = vld [vmem:[%s5 + $0x170] sm:$0xff]
        %v1794 = vld [vmem:[%s5 + $0x178] sm:$0xff]
        %v1795 = vld [vmem:[%s5 + $0x180] sm:$0xff]
        %v1796 = vld [vmem:[%s5 + $0x188] sm:$0xff]
        %v1797 = vld [vmem:[%s5 + $0x190] sm:$0xff]
        %v1798 = vld [vmem:[%s5 + $0x198] sm:$0xff]
        %v1799 = vld [vmem:[%s5 + $0x1a0] sm:$0xff]
        %v1800 = vld [vmem:[%s5 + $0x1a8] sm:$0xff]
        %v1801 = vld [vmem:[%s6] sm:$0x1]
        %v1803 = vperm.slane %v1746, 0
        %v1804 = vperm.slane %v1746, 1
        %v1805 = vperm.slane %v1746, 2
        %v1806 = vperm.slane %v1746, 3
        %vm1810 = vcmask 392192
        %v1811 = vsel %vm1810, %v1806, 0
        %1813 = vmatpush.msra.mxu0 %v1762
        %1814 = vmatpush.msra.mxu0 %v1761
        %1815 = vmatpush.msra.mxu0 %v1760
        %1816 = vmatpush.msra.mxu0 %v1759
        %1817 = vmatpush.msra.mxu0 %v1758
        %1818 = vmatpush.msra.mxu0 %v1757
        %1819 = vmatpush.msra.mxu0 %v1756
        %1820 = vmatpush.msra.mxu0 %v1755
        %1821 = vmatpush.msra.mxu0 %v1754
        %1822 = vmatpush.msra.mxu0 %v1753
        %1823 = vmatpush.msra.mxu0 %v1752
        %1824 = vmatpush.msra.mxu0 %v1751
        %1825 = vmatpush.msra.mxu0 %v1750
        %1826 = vmatpush.msra.mxu0 %v1749
        %1827 = vmatpush.msra.mxu0 %v1748
        %1828 = vmatpush.msra.mxu0 %v1747
        %1829 = vmatmul.f32.gmra.mxu0 %v1803
        %v1830 = vpop.f32.mrf.mxu0
        %v1831 = vadd.f32 %v1801, %v1830
        %1832 = vdwg.mxu0
        %1833 = vmatpush.msra.mxu0 %v1778
        %1834 = vmatpush.msra.mxu0 %v1777
        %1835 = vmatpush.msra.mxu0 %v1776
        %1836 = vmatpush.msra.mxu0 %v1775
        %1837 = vmatpush.msra.mxu0 %v1774
        %1838 = vmatpush.msra.mxu0 %v1773
        %1839 = vmatpush.msra.mxu0 %v1772
        %1840 = vmatpush.msra.mxu0 %v1771
        %1841 = vmatpush.msra.mxu0 %v1770
        %1842 = vmatpush.msra.mxu0 %v1769
        %1843 = vmatpush.msra.mxu0 %v1768
        %1844 = vmatpush.msra.mxu0 %v1767
        %1845 = vmatpush.msra.mxu0 %v1766
        %1846 = vmatpush.msra.mxu0 %v1765
        %1847 = vmatpush.msra.mxu0 %v1764
        %1848 = vmatpush.msra.mxu0 %v1763
        %1849 = vmatmul.f32.gmra.mxu0 %v1804
        %v1850 = vpop.f32.mrf.mxu0
        %v1851 = vadd.f32 %v1831, %v1850
        %1852 = vdwg.mxu0
        %1853 = vmatpush.msra.mxu0 %v1794
        %1854 = vmatpush.msra.mxu0 %v1793
        %1855 = vmatpush.msra.mxu0 %v1792
        %1856 = vmatpush.msra.mxu0 %v1791
        %1857 = vmatpush.msra.mxu0 %v1790
        %1858 = vmatpush.msra.mxu0 %v1789
        %1859 = vmatpush.msra.mxu0 %v1788
        %1860 = vmatpush.msra.mxu0 %v1787
        %1861 = vmatpush.msra.mxu0 %v1786
        %1862 = vmatpush.msra.mxu0 %v1785
        %1863 = vmatpush.msra.mxu0 %v1784
        %1864 = vmatpush.msra.mxu0 %v1783
        %1865 = vmatpush.msra.mxu0 %v1782
        %1866 = vmatpush.msra.mxu0 %v1781
        %1867 = vmatpush.msra.mxu0 %v1780
        %1868 = vmatpush.msra.mxu0 %v1779
        %1869 = vmatmul.f32.gmra.mxu0 %v1805
        %v1870 = vpop.f32.mrf.mxu0
        %v1871 = vadd.f32 %v1851, %v1870
        %1872 = vdwg.mxu0
        %1873 = vmatpush.msra.mxu0 0.0
        %1874 = vmatpush.msra.mxu0 0.0
        %1875 = vmatpush.msra.mxu0 0.0
        %1876 = vmatpush.msra.mxu0 0.0
        %1877 = vmatpush.msra.mxu0 0.0
        %1878 = vmatpush.msra.mxu0 0.0
        %1879 = vmatpush.msra.mxu0 0.0
        %1880 = vmatpush.msra.mxu0 0.0
        %1881 = vmatpush.msra.mxu0 0.0
        %1882 = vmatpush.msra.mxu0 0.0
        %1883 = vmatpush.msra.mxu0 %v1800
        %1884 = vmatpush.msra.mxu0 %v1799
        %1885 = vmatpush.msra.mxu0 %v1798
        %1886 = vmatpush.msra.mxu0 %v1797
        %1887 = vmatpush.msra.mxu0 %v1796
        %1888 = vmatpush.msra.mxu0 %v1795
        %1889 = vmatmul.f32.gmra.mxu0 %v1811
        %v1890 = vpop.f32.mrf.mxu0
        %v1891 = vadd.f32 %v1871, %v1890
        %1892 = vdwg.mxu0
        %v1893 = vmax.f32 %v1891, 0.0
        %v1894 = vld [vmem:[%s7] sm:$0xff]
        %v1895 = vld [vmem:[%s7 + $0x8] sm:$0xff]
        %v1896 = vld [vmem:[%s7 + $0x10] sm:$0xff]
        %v1897 = vld [vmem:[%s7 + $0x18] sm:$0xff]
        %v1898 = vld [vmem:[%s7 + $0x20] sm:$0xff]
        %v1899 = vld [vmem:[%s7 + $0x28] sm:$0xff]
        %v1900 = vld [vmem:[%s7 + $0x30] sm:$0xff]
        %v1901 = vld [vmem:[%s7 + $0x38] sm:$0xff]
        %v1902 = vld [vmem:[%s7 + $0x40] sm:$0xff]
        %v1903 = vld [vmem:[%s7 + $0x48] sm:$0xff]
        %v1904 = vld [vmem:[%s7 + $0x50] sm:$0xff]
        %v1905 = vld [vmem:[%s7 + $0x58] sm:$0xff]
        %v1906 = vld [vmem:[%s7 + $0x60] sm:$0xff]
        %v1907 = vld [vmem:[%s7 + $0x68] sm:$0xff]
        %v1908 = vld [vmem:[%s7 + $0x70] sm:$0xff]
        %v1909 = vld [vmem:[%s8] sm:$0x1]
        %vm1910 = vcmask 982016
        %v1912 = vsel %vm1910, %v1893, 0
        %1914 = vmatpush.msra.mxu0 0.0
        %1915 = vmatpush.msra.mxu0 %v1908
        %1916 = vmatpush.msra.mxu0 %v1907
        %1917 = vmatpush.msra.mxu0 %v1906
        %1918 = vmatpush.msra.mxu0 %v1905
        %1919 = vmatpush.msra.mxu0 %v1904
        %1920 = vmatpush.msra.mxu0 %v1903
        %1921 = vmatpush.msra.mxu0 %v1902
        %1922 = vmatpush.msra.mxu0 %v1901
        %1923 = vmatpush.msra.mxu0 %v1900
        %1924 = vmatpush.msra.mxu0 %v1899
        %1925 = vmatpush.msra.mxu0 %v1898
        %1926 = vmatpush.msra.mxu0 %v1897
        %1927 = vmatpush.msra.mxu0 %v1896
        %1928 = vmatpush.msra.mxu0 %v1895
        %1929 = vmatpush.msra.mxu0 %v1894
        %1930 = vmatmul.f32.gmra.mxu0 %v1912
        %v1931 = vpop.f32.mrf.mxu0
        %v1932 = vadd.f32 %v1909, %v1931
        %1933 = vdwg.mxu0
        %v1934 = vmax.f32 %v1932, 0.0
        %v1935 = vld [vmem:[%s9] sm:$0xff]
        %v1936 = vld [vmem:[%s9 + $0x8] sm:$0xff]
        %v1937 = vld [vmem:[%s9 + $0x10] sm:$0xff]
        %v1938 = vld [vmem:[%s9 + $0x18] sm:$0xff]
        %v1939 = vld [vmem:[%s9 + $0x20] sm:$0xff]
        %v1940 = vld [vmem:[%s9 + $0x28] sm:$0xff]
        %v1941 = vld [vmem:[%s9 + $0x30] sm:$0xff]
        %v1942 = vld [vmem:[%s9 + $0x38] sm:$0xff]
        %v1943 = vld [vmem:[%s9 + $0x40] sm:$0xff]
        %v1944 = vld [vmem:[%s9 + $0x48] sm:$0xff]
        %v1945 = vld [vmem:[%s9 + $0x50] sm:$0xf]
        %v1946 = vld [vmem:[%s10] sm:$0x1]
        %vm1947 = vcmask 687104
        %v1949 = vsel %vm1947, %v1934, 0
        %v1952 = vsel %vm973, %v1945, 0
        %1954 = vmatpush.msra.mxu0 0.0
        %1955 = vmatpush.msra.mxu0 0.0
        %1956 = vmatpush.msra.mxu0 0.0
        %1957 = vmatpush.msra.mxu0 0.0
        %1958 = vmatpush.msra.mxu0 0.0
        %1959 = vmatpush.msra.mxu0 %v1952
        %1960 = vmatpush.msra.mxu0 %v1944
        %1961 = vmatpush.msra.mxu0 %v1943
        %1962 = vmatpush.msra.mxu0 %v1942
        %1963 = vmatpush.msra.mxu0 %v1941
        %1964 = vmatpush.msra.mxu0 %v1940
        %1965 = vmatpush.msra.mxu0 %v1939
        %1966 = vmatpush.msra.mxu0 %v1938
        %1967 = vmatpush.msra.mxu0 %v1937
        %1968 = vmatpush.msra.mxu0 %v1936
        %1969 = vmatpush.msra.mxu0 %v1935
        %1970 = vmatmul.f32.gmra.mxu0 %v1949
        %v1971 = vpop.f32.mrf.mxu0
        %v1972 = vadd.f32 %v1946, %v1971
        %1973 = vdwg.mxu0
        %vm1974 = vcmask 73728
        %1975 = vst.msk [vmem:[%s378] sm:$0x1] %vm1974, %v1972
        %s1976 = sand.u32 %s269, 1
        %s1977 = scalar_lea.sflag [#allocation10], %s1976
        %s1978 = sand.u32 %s269, 1
        %s1979 = scalar_lea.vmem [#allocation9], %s1978
        // Predicated region
        $region65: #{abcnn_1d_forward.1} parent=63 // pred_check
          %p1980 = pneg %p279
        $region66: #{abcnn_1d_forward.1} parent=63 // pred_check_branch
          %1982 = sbr.rel (%p1980) target = $region68
        $region67: #{abcnn_1d_forward.1} parent=63 // pred_region
          %1984 = vsyncadd %s1977, 0
          %s1985 = scalar_lea.hbm %s11, %s25
          %s1987 = sshll.u32 %s1979, 4
          %s1988 = int_to_ptr.vmem [resolvable:$true] %s1987
          %s1989 = sshll.u32 %s1985, 4
          %s1990 = int_to_ptr.hbm [resolvable:$true] %s1989
          %1992 = dma.vmem_to_hbm [thread:$0]  %s1988, 16, %s1990, %s1977
        $region68: #{abcnn_1d_forward.1} parent=63 // pred_fallthru
          _
      $region64: #{abcnn_1d_forward.1} parent=5 // pred_fallthru
        _
      %p1993 = scmp.le.s32.totalorder 2, %s20
      // Predicated region
      $region69: #{abcnn_1d_forward.1} parent=5 // pred_check
        %p1994 = pneg %p1993
      $region70: #{abcnn_1d_forward.1} parent=5 // pred_check_branch
        %1996 = sbr.rel (%p1994) target = $region72
      $region71: #{abcnn_1d_forward.1} parent=5 // pred_region
        %s1997 = ssub.s32 %s20, 2
        // Predicated region
        $region73: #{abcnn_1d_forward.1} parent=71 // pred_check
          %p1998 = pneg %p285
        $region74: #{abcnn_1d_forward.1} parent=71 // pred_check_branch
          %2000 = sbr.rel (%p1998) target = $region76
        $region75: #{abcnn_1d_forward.1} parent=71 // pred_region
          %s2001 = sand.u32 %s270, 1
          %s2002 = scalar_lea.sflag [#allocation10], %s2001
          %s2003 = sand.u32 %s270, 1
          %s2004 = scalar_lea.vmem [#allocation9], %s2003
          %2006 = dma.done %s2002, 16
        $region76: #{abcnn_1d_forward.1} parent=71 // pred_fallthru
          _
      $region72: #{abcnn_1d_forward.1} parent=5 // pred_fallthru
        _
    $region6: #{abcnn_1d_forward.1} parent=1 // loop_footer
      %s24 = sadd.s32 1, %s20
    $region7: #{abcnn_1d_forward.1} parent=1 // loop_footer_branch
      %19 = sbr.rel target = $region3
    $region8: #{abcnn_1d_forward.1} parent=1 // loop_exit
      _
    %2007 = vsyncpa [#allocation10], 1
    %s2008 = scalar_lea.sflag [#allocation10], 1
    %2009 = vsyncpa %s2008, 1

</llo_original>
